<compile_context>
chip_gen: v5e
topology: v5e:2x2
jax: 0.10.0
libtpu: 0.0.40
codegen_flags: <defaults>
</compile_context>

<pallas_src>
import jax
import jax.numpy as jnp
import numpy as np
from jax.experimental import pallas as pl
from jax.experimental.pallas import tpu as pltpu

K_SIZES = (3, 5, 7)   # args.k_size
CH = 12               # args.channel_size (conv out channels)


# ------------------------------- Pallas kernel -------------------------------

def _hgnn_kernel(x_ref,      # (B*N, W)          f32  VMEM  batch-major rows
                 w_ref,      # (W+2*F, F)        bf16 VMEM  [T ; W1 ; W2]
                 b_ref,      # (4*B*N, F)        f32  VMEM  [tb ; b1 ; b2 ; g3w]
                 ablk_ref,   # (B*N, B*N)        bf16 VMEM  kron(I_B, A_hat)
                 g3b_ref,    # (1,)              f32  SMEM  final scalar bias
                 out_ref):   # (B*N, 1)          f32  VMEM
    BN, W = x_ref.shape
    fdim = w_ref.shape[1]

    a_blk = ablk_ref[...]                               # (BN, BN) bf16

    t_mat = w_ref[0:W, :]                               # (W, F)    bf16
    w1 = w_ref[W:W + fdim, :]                           # (F, F)    bf16
    w2 = w_ref[W + fdim:W + 2 * fdim, :]                # (F, F)    bf16

    t_b = b_ref[0 * BN:1 * BN, :]                       # (BN, F)   f32
    b1 = b_ref[1 * BN:2 * BN, :]
    b2 = b_ref[2 * BN:3 * BN, :]
    g3w = b_ref[3 * BN:4 * BN, :]

    # ---- encoder: all three 1x{3,5,7} convs + bias + relu as ONE matmul ----
    feat = jnp.maximum(
        jnp.dot(x_ref[...].astype(jnp.bfloat16), t_mat,
                preferred_element_type=jnp.float32) + t_b, 0.0)     # (BN, F)

    # ---- GCN layer 1: relu(A_blk @ (feat @ W1) + b1) ----
    h1 = jnp.dot(feat.astype(jnp.bfloat16), w1,
                 preferred_element_type=jnp.float32)                # (BN, F)
    x1 = jnp.maximum(
        jnp.dot(a_blk, h1.astype(jnp.bfloat16),
                preferred_element_type=jnp.float32) + b1, 0.0)      # (BN, F)

    # ---- GCN layer 2 ----
    h2 = jnp.dot(x1.astype(jnp.bfloat16), w2,
                 preferred_element_type=jnp.float32)                # (BN, F)
    x2 = jnp.maximum(
        jnp.dot(a_blk, h2.astype(jnp.bfloat16),
                preferred_element_type=jnp.float32) + b2, 0.0)      # (BN, F)

    # ---- GCN layer 3: A_blk @ (x2 @ w3) + b3 == (A_blk @ x2) @ w3 + b3 ----
    # aggregate first (wide matmul), then the width-1 projection on VPU + XLU.
    y2 = jnp.dot(a_blk, x2.astype(jnp.bfloat16),
                 preferred_element_type=jnp.float32)                # (BN, F)
    out_ref[...] = jnp.sum(y2 * g3w, axis=-1, keepdims=True) + g3b_ref[0]


# --------------------- host-side (one-time) precompute ------------------------

def _build_toeplitz(conv_params, window):
    """Fold the 1x{3,5,7} convs into one (W, d) matrix + (1, d) bias row."""
    t_blocks, b_blocks = [], []
    for (w, b), k in zip(conv_params, K_SIZES):
        wout = window - k + 1
        rows = jnp.arange(window)[:, None]          # (W, 1)
        cols = jnp.arange(wout)[None, :]            # (1, wout)
        tap = rows - cols                           # tap index j = r - t
        valid = ((tap >= 0) & (tap < k)).astype(w.dtype)
        tap_c = jnp.clip(tap, 0, k - 1)
        gathered = w[:, tap_c] * valid[None]        # (CH, W, wout)
        t_blocks.append(jnp.transpose(gathered, (1, 0, 2)).reshape(window, CH * wout))
        b_blocks.append(jnp.repeat(b, wout))        # channel-major, time-minor
    t = jnp.concatenate(t_blocks, axis=1)           # (W, d)
    tb = jnp.concatenate(b_blocks)[None, :]         # (1, d)
    return t, tb


def prepare_inputs(params, a_hat, batch_size, window):
    """Params-only precompute.  Call ONCE; returns the constant kernel inputs."""
    (g1w, g1b), (g2w, g2b), (g3w, g3b) = params["gcn"]
    hid1, hid2 = g2w.shape
    n_nodes = a_hat.shape[0]
    bn = batch_size * n_nodes

    t_mat, t_bias = _build_toeplitz(params["conv"], window)     # (W, d), (1, d)
    d = t_mat.shape[1]
    fdim = ((d + 127) // 128) * 128                             # lane-aligned width

    def pad_cols(a):
        return jnp.pad(a, ((0, 0), (0, fdim - a.shape[1])))

    # bf16 weight slab: [T ; W1_pad ; W2_pad], all width fdim, zero-padded so
    # padded lanes stay exactly zero through every layer.
    t_pad = pad_cols(t_mat)                                                 # (W, F)
    w1_pad = jnp.zeros((fdim, fdim), jnp.float32).at[:d, :hid1].set(g1w)    # (F, F)
    w2_pad = jnp.zeros((fdim, fdim), jnp.float32).at[:hid1, :hid2].set(g2w) # (F, F)
    w_slab = jnp.concatenate([t_pad, w1_pad, w2_pad], axis=0).astype(jnp.bfloat16)

    # f32 bias slab: each bias row pre-broadcast to bn rows (full-tile adds).
    def band(row2d):
        return jnp.broadcast_to(pad_cols(row2d), (bn, fdim))
    b_slab = jnp.concatenate([
        band(t_bias),
        band(g1b.reshape(1, hid1)),
        band(g2b.reshape(1, hid2)),
        band(g3w.reshape(1, hid2)),        # final projection as a row
    ], axis=0).astype(jnp.float32)                                          # (4*bn, F)

    # block-diagonal normalized adjacency (batch-major aggregation).
    a_blk = jnp.kron(jnp.eye(batch_size, dtype=jnp.float32),
                     a_hat.astype(jnp.float32)).astype(jnp.bfloat16)        # (bn, bn)

    return {"w_slab": w_slab, "b_slab": b_slab, "a_blk": a_blk,
            "g3b": g3b.reshape(1).astype(jnp.float32)}


# ------------------------------- forward wrapper -------------------------------

@jax.jit
def hgnn_forward(x, prep):
    """x: (B, window, n_e) f32 -> (B, n_e) f32."""
    B, W, N = x.shape
    bn = B * N
    x2d = jnp.transpose(x, (0, 2, 1)).reshape(bn, W).astype(jnp.float32)

    out = pl.pallas_call(
        _hgnn_kernel,
        out_shape=jax.ShapeDtypeStruct((bn, 1), jnp.float32),
        in_specs=[
            pl.BlockSpec(memory_space=pltpu.MemorySpace.VMEM),   # x2d
            pl.BlockSpec(memory_space=pltpu.MemorySpace.VMEM),   # weight slab
            pl.BlockSpec(memory_space=pltpu.MemorySpace.VMEM),   # bias slab
            pl.BlockSpec(memory_space=pltpu.MemorySpace.VMEM),   # block-diag A_hat
            pl.BlockSpec(memory_space=pltpu.MemorySpace.SMEM),   # g3b scalar
        ],
        out_specs=pl.BlockSpec(memory_space=pltpu.MemorySpace.VMEM),
    )(x2d, prep["w_slab"], prep["b_slab"], prep["a_blk"], prep["g3b"])
    return out.reshape(B, N)                                     # == x3.squeeze()


# ---------------- parameter / adjacency setup (glue, plain JAX) ----------------

def init_params(key, window, hid1, hid2):
    d = sum(CH * (window - k + 1) for k in K_SIZES)
    ks = jax.random.split(key, 12)

    def nrm(k, shape, scale):
        return scale * jax.random.normal(k, shape, jnp.float32)

    conv = []
    for i, k in enumerate(K_SIZES):
        conv.append((nrm(ks[2 * i], (CH, k), 0.2), nrm(ks[2 * i + 1], (CH,), 0.1)))
    gcn = [
        (nrm(ks[6], (d, hid1), 0.1),    nrm(ks[7], (1, hid1), 0.1)),
        (nrm(ks[8], (hid1, hid2), 0.1), nrm(ks[9], (1, hid2), 0.1)),
        (nrm(ks[10], (hid2, 1), 0.1),   nrm(ks[11], (1, 1), 0.1)),
    ]
    return {"conv": conv, "gcn": gcn}, d


def make_a_hat(n_e):
    # Original module builds A = ones(N,N)/N; DenseGCNConv adds self loops and
    # symmetric-normalizes: A_hat = D^-1/2 (A + I) D^-1/2.
    A = np.ones((n_e, n_e), np.float32) / n_e
    adj = A.copy()
    np.fill_diagonal(adj, 1.0)
    deg_inv_sqrt = np.clip(adj.sum(-1), 1.0, None) ** -0.5
    a_hat = deg_inv_sqrt[:, None] * adj * deg_inv_sqrt[None, :]
    return jnp.asarray(a_hat, jnp.float32)


# ---------------- pure-JAX reference (mirrors the PyTorch forward) -------------

def reference_forward(x, params, a_hat):
    (g1w, g1b), (g2w, g2b), (g3w, g3b) = params["gcn"]
    B, W, N = x.shape
    c = jnp.transpose(x, (0, 2, 1))                   # (B, N, W)
    feats = []
    for (w, b), k in zip(params["conv"], K_SIZES):
        wout = W - k + 1
        y = jnp.zeros((B, N, CH, wout), jnp.float32)
        for j in range(k):
            y = y + c[:, :, j:j + wout][:, :, None, :] * w[:, j][None, None, :, None]
        y = y + b.reshape(1, 1, CH, 1)
        feats.append(y.reshape(B, N, CH * wout))
    xc = jnp.maximum(jnp.concatenate(feats, axis=2), 0.0)

    hi = jax.lax.Precision.HIGHEST

    def gcn(h, wg, bg):
        hw = jnp.einsum('bnf,fo->bno', h, wg, precision=hi)
        return jnp.einsum('nm,bmo->bno', a_hat, hw, precision=hi) + bg

    x1 = jnp.maximum(gcn(xc, g1w, g1b), 0.0)
    x2 = jnp.maximum(gcn(x1, g2w, g2b), 0.0)
    x3 = gcn(x2, g3w, g3b)
    return x3[..., 0]


if __name__ == "__main__":
    B, window, n_e = 2, 16, 8      # batch, args.window, args.n_e (nodes)
    hid1, hid2 = 32, 16            # args.hid1, args.hid2

    key = jax.random.PRNGKey(0)
    kx, kp = jax.random.split(key)
    params, d = init_params(kp, window, hid1, hid2)
    a_hat = make_a_hat(n_e)
    x = jax.random.normal(kx, (B, window, n_e), jnp.float32)

    # one-time host precompute (Toeplitz fold, padding, broadcasts, kron)
    prep = jax.block_until_ready(
        jax.tree_util.tree_map(lambda a: a,
                               prepare_inputs(params, a_hat, B, window)))

    out = jax.block_until_ready(hgnn_forward(x, prep))
    ref = jax.block_until_ready(reference_forward(x, params, a_hat))

    assert out.shape == (B, n_e), out.shape
    # bf16 MXU inputs (f32 accumulation): allow ~2% tolerance vs f32 reference.
    assert np.allclose(np.asarray(out), np.asarray(ref), rtol=2e-2, atol=2e-2)
    print("KERNEL_OK")
</pallas_src>

<mosaic_0001>
module attributes {stable_mosaic.version = 11 : i64} {
  func.func @_hgnn_kernel(%arg0: memref<16x16xf32, #tpu.memory_space<vmem>>, %arg1: memref<1040x512xbf16, #tpu.memory_space<vmem>>, %arg2: memref<64x512xf32, #tpu.memory_space<vmem>>, %arg3: memref<16x16xbf16, #tpu.memory_space<vmem>>, %arg4: memref<1xf32, #tpu.memory_space<smem>>, %arg5: memref<16x1xf32, #tpu.memory_space<vmem>>) attributes {dimension_semantics = [], scalar_prefetch = 0 : i64, scratch_operands = 0 : i64, tpu.core_type = #tpu.core_type<tc>} {
    %c0 = arith.constant 0 : index
    %c0_0 = arith.constant 0 : index
    %0 = vector.load %arg3[%c0, %c0_0] : memref<16x16xbf16, #tpu.memory_space<vmem>>, vector<16x16xbf16>
    %c0_1 = arith.constant 0 : index
    %c0_2 = arith.constant 0 : index
    %1 = vector.load %arg1[%c0_1, %c0_2] : memref<1040x512xbf16, #tpu.memory_space<vmem>>, vector<16x512xbf16>
    %c16 = arith.constant 16 : index
    %c0_3 = arith.constant 0 : index
    %2 = vector.load %arg1[%c16, %c0_3] : memref<1040x512xbf16, #tpu.memory_space<vmem>>, vector<512x512xbf16>
    %c528 = arith.constant 528 : index
    %c0_4 = arith.constant 0 : index
    %3 = vector.load %arg1[%c528, %c0_4] : memref<1040x512xbf16, #tpu.memory_space<vmem>>, vector<512x512xbf16>
    %c0_5 = arith.constant 0 : index
    %c0_6 = arith.constant 0 : index
    %4 = vector.load %arg2[%c0_5, %c0_6] : memref<64x512xf32, #tpu.memory_space<vmem>>, vector<16x512xf32>
    %c16_7 = arith.constant 16 : index
    %c0_8 = arith.constant 0 : index
    %5 = vector.load %arg2[%c16_7, %c0_8] : memref<64x512xf32, #tpu.memory_space<vmem>>, vector<16x512xf32>
    %c32 = arith.constant 32 : index
    %c0_9 = arith.constant 0 : index
    %6 = vector.load %arg2[%c32, %c0_9] : memref<64x512xf32, #tpu.memory_space<vmem>>, vector<16x512xf32>
    %c48 = arith.constant 48 : index
    %c0_10 = arith.constant 0 : index
    %7 = vector.load %arg2[%c48, %c0_10] : memref<64x512xf32, #tpu.memory_space<vmem>>, vector<16x512xf32>
    %c0_11 = arith.constant 0 : index
    %c0_12 = arith.constant 0 : index
    %8 = vector.load %arg0[%c0_11, %c0_12] : memref<16x16xf32, #tpu.memory_space<vmem>>, vector<16x16xf32>
    %9 = arith.truncf %8 : vector<16x16xf32> to vector<16x16xbf16>
    %cst = arith.constant dense<0.000000e+00> : vector<16x512xf32>
    %10 = tpu.matmul %9, %1, %cst {dimension_numbers = #tpu.dot_dimension_numbers<[1], [0], [0], [1], [0, 0, 1, 1], [], []>} : vector<16x16xbf16>, vector<16x512xbf16>, vector<16x512xf32> -> vector<16x512xf32>
    %11 = arith.addf %10, %4 : vector<16x512xf32>
    %cst_13 = arith.constant 0.000000e+00 : f32
    %12 = vector.broadcast %cst_13 : f32 to vector<16x512xf32>
    %13 = arith.maximumf %11, %12 : vector<16x512xf32>
    %14 = arith.truncf %13 : vector<16x512xf32> to vector<16x512xbf16>
    %cst_14 = arith.constant dense<0.000000e+00> : vector<16x512xf32>
    %15 = tpu.matmul %14, %2, %cst_14 {dimension_numbers = #tpu.dot_dimension_numbers<[1], [0], [0], [1], [0, 0, 1, 1], [], []>} : vector<16x512xbf16>, vector<512x512xbf16>, vector<16x512xf32> -> vector<16x512xf32>
    %16 = arith.truncf %15 : vector<16x512xf32> to vector<16x512xbf16>
    %cst_15 = arith.constant dense<0.000000e+00> : vector<16x512xf32>
    %17 = tpu.matmul %0, %16, %cst_15 {dimension_numbers = #tpu.dot_dimension_numbers<[1], [0], [0], [1], [0, 0, 1, 1], [], []>} : vector<16x16xbf16>, vector<16x512xbf16>, vector<16x512xf32> -> vector<16x512xf32>
    %18 = arith.addf %17, %5 : vector<16x512xf32>
    %cst_16 = arith.constant 0.000000e+00 : f32
    %19 = vector.broadcast %cst_16 : f32 to vector<16x512xf32>
    %20 = arith.maximumf %18, %19 : vector<16x512xf32>
    %21 = arith.truncf %20 : vector<16x512xf32> to vector<16x512xbf16>
    %cst_17 = arith.constant dense<0.000000e+00> : vector<16x512xf32>
    %22 = tpu.matmul %21, %3, %cst_17 {dimension_numbers = #tpu.dot_dimension_numbers<[1], [0], [0], [1], [0, 0, 1, 1], [], []>} : vector<16x512xbf16>, vector<512x512xbf16>, vector<16x512xf32> -> vector<16x512xf32>
    %23 = arith.truncf %22 : vector<16x512xf32> to vector<16x512xbf16>
    %cst_18 = arith.constant dense<0.000000e+00> : vector<16x512xf32>
    %24 = tpu.matmul %0, %23, %cst_18 {dimension_numbers = #tpu.dot_dimension_numbers<[1], [0], [0], [1], [0, 0, 1, 1], [], []>} : vector<16x16xbf16>, vector<16x512xbf16>, vector<16x512xf32> -> vector<16x512xf32>
    %25 = arith.addf %24, %6 : vector<16x512xf32>
    %cst_19 = arith.constant 0.000000e+00 : f32
    %26 = vector.broadcast %cst_19 : f32 to vector<16x512xf32>
    %27 = arith.maximumf %25, %26 : vector<16x512xf32>
    %28 = arith.truncf %27 : vector<16x512xf32> to vector<16x512xbf16>
    %cst_20 = arith.constant dense<0.000000e+00> : vector<16x512xf32>
    %29 = tpu.matmul %0, %28, %cst_20 {dimension_numbers = #tpu.dot_dimension_numbers<[1], [0], [0], [1], [0, 0, 1, 1], [], []>} : vector<16x16xbf16>, vector<16x512xbf16>, vector<16x512xf32> -> vector<16x512xf32>
    %30 = arith.mulf %29, %7 : vector<16x512xf32>
    %cst_21 = arith.constant dense<0.000000e+00> : vector<16xf32>
    %31 = vector.multi_reduction <add>, %30, %cst_21 [1] : vector<16x512xf32> to vector<16xf32>
    %32 = vector.shape_cast %31 : vector<16xf32> to vector<16x1xf32>
    %c0_22 = arith.constant 0 : index
    %33 = memref.load %arg4[%c0_22] : memref<1xf32, #tpu.memory_space<smem>>
    %34 = vector.broadcast %33 : f32 to vector<16x1xf32>
    %35 = arith.addf %32, %34 : vector<16x1xf32>
    %c0_23 = arith.constant 0 : index
    %c0_24 = arith.constant 0 : index
    %36 = vector.load %arg5[%c0_23, %c0_24] : memref<16x1xf32, #tpu.memory_space<vmem>>, vector<16x1xf32>
    tpu.vector_store %arg5[%c0_23, %c0_24], %35 {strides = array<i32>} : memref<16x1xf32, #tpu.memory_space<vmem>>, vector<16x1xf32>,
    return
  }
}

</mosaic_0001>

<llo_original>
// kernel: hgnn_forward.1
$region0: #{hgnn_forward.1}
  #allocation0 [shape = 'u32[]', space=smem, size = 0x4, offset = 0x4, fixed_abs, tag = 'smem constant byte address 0x4 - core index']
  #allocation1 [shape = 'u32[72,128]{1,0:T(1,128)}', space=vmem, size = 0x9000, scoped, tag = 'internal scratch']
  #allocation2 [shape = 'f32[1]{0:T(128)S(6)}', space=smem, size = 0x200, scoped, tag = 'scoped memory for hgnn_forward.1']
  %s0 = inlined_call_operand.hbm [shape: f32[16,16], index: 0, kind: input, shape index: {}]
  %s1 = inlined_call_operand.hbm [shape: bf16[1040,512], index: 1, kind: input, shape index: {}]
  %s2 = inlined_call_operand.hbm [shape: f32[64,512], index: 2, kind: input, shape index: {}]
  %s3 = inlined_call_operand.hbm [shape: bf16[16,16], index: 3, kind: input, shape index: {}]
  %s4 = inlined_call_operand.<no memory space> [shape: f32[1], index: 4, kind: input, shape index: {}]
  %s5 = inlined_call_operand.vmem [shape: f32[16,1], index: 5, kind: output, shape index: {}]
  %s6 = sld [smem:[#allocation0]]
  $region46: #{hgnn_forward.1} parent=0
    _
  %s8 = ssub.s32 1, %s6
  %s9 = scalar_select 0, %s8, %s6
  %10 = sst [smem:[#allocation2]] %s4
  $region1: #{hgnn_forward.1} parent=0
    #allocation3 [shape = 'u8[8192]{0}', space=vmem, size = 0x2000, scoped, tag = 'input window, operand 0, single buffered']
    #allocation4 [shape = 's32[1]{0}', space=sflag, size = 0x4, scoped, tag = 'scoped memory for hgnn_forward.1']
    #allocation5 [shape = 'u8[1064960]{0}', space=vmem, size = 0x104000, scoped, tag = 'input window, operand 1, single buffered']
    #allocation6 [shape = 's32[1]{0}', space=sflag, size = 0x4, scoped, tag = 'scoped memory for hgnn_forward.1']
    #allocation7 [shape = 'u8[131072]{0}', space=vmem, size = 0x20000, scoped, tag = 'input window, operand 2, single buffered']
    #allocation8 [shape = 'u8[4096]{0}', space=vmem, size = 0x1000, scoped, tag = 'input window, operand 3, single buffered']
    #allocation9 [shape = 's32[1]{0}', space=sflag, size = 0x4, scoped, tag = 'scoped memory for hgnn_forward.1']
    %11 = vsyncpa [#allocation4], 0
    %12 = vsyncpa [#allocation6], 0
    %13 = vsyncpa [#allocation9], 0
    // Predicated region
    $region2: #{hgnn_forward.1} parent=1 // pred_check
      _
    $region3: #{hgnn_forward.1} parent=1 // pred_check_branch
      %15 = sbr.rel (0) target = $region5
    $region4: #{hgnn_forward.1} parent=1 // pred_region
      %17 = vsyncadd [#allocation4], 0
      %s18 = sshll.u32 %s0, 4
      %s19 = int_to_ptr.hbm [resolvable:$true] %s18
      %s20 = sshll.u32 [#allocation3], 4
      %s21 = int_to_ptr.vmem [resolvable:$true] %s20
      %26 = dma.hbm_to_vmem [thread:$0]  %s19, 256, %s21, [#allocation4], 128, 128, 8
    $region5: #{hgnn_forward.1} parent=1 // pred_fallthru
      _
    // Predicated region
    $region6: #{hgnn_forward.1} parent=1 // pred_check
      _
    $region7: #{hgnn_forward.1} parent=1 // pred_check_branch
      %28 = sbr.rel (0) target = $region9
    $region8: #{hgnn_forward.1} parent=1 // pred_region
      %30 = vsyncadd [#allocation6], 0
      %s31 = sshll.u32 %s1, 4
      %s32 = int_to_ptr.hbm [resolvable:$true] %s31
      %s33 = sshll.u32 [#allocation5], 4
      %s34 = int_to_ptr.vmem [resolvable:$true] %s33
      %39 = dma.hbm_to_vmem [thread:$0]  %s32, 33280, %s34, [#allocation6], 256, 256, 16
    $region9: #{hgnn_forward.1} parent=1 // pred_fallthru
      _
    // Predicated region
    $region10: #{hgnn_forward.1} parent=1 // pred_check
      _
    $region11: #{hgnn_forward.1} parent=1 // pred_check_branch
      %41 = sbr.rel (0) target = $region13
    $region12: #{hgnn_forward.1} parent=1 // pred_region
      %43 = vsyncadd [#allocation6], 0
      %s44 = sshll.u32 %s2, 4
      %s45 = int_to_ptr.hbm [resolvable:$true] %s44
      %s46 = sshll.u32 [#allocation7], 4
      %s47 = int_to_ptr.vmem [resolvable:$true] %s46
      %52 = dma.hbm_to_vmem [thread:$0]  %s45, 4096, %s47, [#allocation6], 512, 512, 32
    $region13: #{hgnn_forward.1} parent=1 // pred_fallthru
      _
    // Predicated region
    $region14: #{hgnn_forward.1} parent=1 // pred_check
      _
    $region15: #{hgnn_forward.1} parent=1 // pred_check_branch
      %54 = sbr.rel (0) target = $region17
    $region16: #{hgnn_forward.1} parent=1 // pred_region
      %56 = vsyncadd [#allocation9], 0
      %s57 = sshll.u32 %s3, 4
      %s58 = int_to_ptr.hbm [resolvable:$true] %s57
      %s59 = sshll.u32 [#allocation8], 4
      %s60 = int_to_ptr.vmem [resolvable:$true] %s59
      %65 = dma.hbm_to_vmem [thread:$0]  %s58, 128, %s60, [#allocation9], 64, 64, 4
    $region17: #{hgnn_forward.1} parent=1 // pred_fallthru
      _
    // Predicated region
    $region18: #{hgnn_forward.1} parent=1 // pred_check
      _
    $region19: #{hgnn_forward.1} parent=1 // pred_check_branch
      %67 = sbr.rel (0) target = $region21
    $region20: #{hgnn_forward.1} parent=1 // pred_region
      _
    $region21: #{hgnn_forward.1} parent=1 // pred_fallthru
      _
    // Predicated region
    $region22: #{hgnn_forward.1} parent=1 // pred_check
      _
    $region23: #{hgnn_forward.1} parent=1 // pred_check_branch
      %69 = sbr.rel (0) target = $region25
    $region24: #{hgnn_forward.1} parent=1 // pred_region
      %71 = dma.done [#allocation4], 256
    $region25: #{hgnn_forward.1} parent=1 // pred_fallthru
      _
    // Predicated region
    $region26: #{hgnn_forward.1} parent=1 // pred_check
      _
    $region27: #{hgnn_forward.1} parent=1 // pred_check_branch
      %73 = sbr.rel (0) target = $region29
    $region28: #{hgnn_forward.1} parent=1 // pred_region
      %75 = dma.done [#allocation6], 33280
    $region29: #{hgnn_forward.1} parent=1 // pred_fallthru
      _
    // Predicated region
    $region30: #{hgnn_forward.1} parent=1 // pred_check
      _
    $region31: #{hgnn_forward.1} parent=1 // pred_check_branch
      %77 = sbr.rel (0) target = $region33
    $region32: #{hgnn_forward.1} parent=1 // pred_region
      %79 = dma.done [#allocation6], 4096
    $region33: #{hgnn_forward.1} parent=1 // pred_fallthru
      _
    // Predicated region
    $region34: #{hgnn_forward.1} parent=1 // pred_check
      _
    $region35: #{hgnn_forward.1} parent=1 // pred_check_branch
      %81 = sbr.rel (0) target = $region37
    $region36: #{hgnn_forward.1} parent=1 // pred_region
      %83 = dma.done [#allocation9], 128
    $region37: #{hgnn_forward.1} parent=1 // pred_fallthru
      _
    %v85 = vld [vmem:[#allocation8] sm:$0xf]
    %v86 = vld [vmem:[#allocation8 + $0x4] sm:$0xf]
    %v87 = vld [vmem:[#allocation5] sm:$0xff]
    %v88 = vld [vmem:[#allocation5 + $0x8] sm:$0xff]
    %v89 = vld [vmem:[#allocation5 + $0x10] sm:$0xff]
    %v90 = vld [vmem:[#allocation5 + $0x18] sm:$0xff]
    %v91 = vld [vmem:[#allocation5 + $0x20] sm:$0xff]
    %v92 = vld [vmem:[#allocation5 + $0x28] sm:$0xff]
    %v93 = vld [vmem:[#allocation5 + $0x30] sm:$0xff]
    %v94 = vld [vmem:[#allocation5 + $0x38] sm:$0xff]
    %v95 = vld [vmem:[#allocation5 + $0x40] sm:$0xff]
    %v96 = vld [vmem:[#allocation5 + $0x48] sm:$0xff]
    %v97 = vld [vmem:[#allocation5 + $0x50] sm:$0xff]
    %v98 = vld [vmem:[#allocation5 + $0x58] sm:$0xff]
    %v99 = vld [vmem:[#allocation5 + $0x60] sm:$0xff]
    %v100 = vld [vmem:[#allocation5 + $0x68] sm:$0xff]
    %v101 = vld [vmem:[#allocation5 + $0x70] sm:$0xff]
    %v102 = vld [vmem:[#allocation5 + $0x78] sm:$0xff]
    %v103 = vld [vmem:[#allocation5 + $0x80] sm:$0xff]
    %v104 = vld [vmem:[#allocation5 + $0x88] sm:$0xff]
    %v105 = vld [vmem:[#allocation5 + $0x90] sm:$0xff]
    %v106 = vld [vmem:[#allocation5 + $0x98] sm:$0xff]
    %v107 = vld [vmem:[#allocation5 + $0xa0] sm:$0xff]
    %v108 = vld [vmem:[#allocation5 + $0xa8] sm:$0xff]
    %v109 = vld [vmem:[#allocation5 + $0xb0] sm:$0xff]
    %v110 = vld [vmem:[#allocation5 + $0xb8] sm:$0xff]
    %v111 = vld [vmem:[#allocation5 + $0xc0] sm:$0xff]
    %v112 = vld [vmem:[#allocation5 + $0xc8] sm:$0xff]
    %v113 = vld [vmem:[#allocation5 + $0xd0] sm:$0xff]
    %v114 = vld [vmem:[#allocation5 + $0xd8] sm:$0xff]
    %v115 = vld [vmem:[#allocation5 + $0xe0] sm:$0xff]
    %v116 = vld [vmem:[#allocation5 + $0xe8] sm:$0xff]
    %v117 = vld [vmem:[#allocation5 + $0xf0] sm:$0xff]
    %v118 = vld [vmem:[#allocation5 + $0xf8] sm:$0xff]
    %v119 = vld [vmem:[#allocation5 + $0x100] sm:$0xff]
    %v120 = vld [vmem:[#allocation5 + $0x108] sm:$0xff]
    %v121 = vld [vmem:[#allocation5 + $0x110] sm:$0xff]
    %v122 = vld [vmem:[#allocation5 + $0x118] sm:$0xff]
    %v123 = vld [vmem:[#allocation5 + $0x120] sm:$0xff]
    %v124 = vld [vmem:[#allocation5 + $0x128] sm:$0xff]
    %v125 = vld [vmem:[#allocation5 + $0x130] sm:$0xff]
    %v126 = vld [vmem:[#allocation5 + $0x138] sm:$0xff]
    %v127 = vld [vmem:[#allocation5 + $0x140] sm:$0xff]
    %v128 = vld [vmem:[#allocation5 + $0x148] sm:$0xff]
    %v129 = vld [vmem:[#allocation5 + $0x150] sm:$0xff]
    %v130 = vld [vmem:[#allocation5 + $0x158] sm:$0xff]
    %v131 = vld [vmem:[#allocation5 + $0x160] sm:$0xff]
    %v132 = vld [vmem:[#allocation5 + $0x168] sm:$0xff]
    %v133 = vld [vmem:[#allocation5 + $0x170] sm:$0xff]
    %v134 = vld [vmem:[#allocation5 + $0x178] sm:$0xff]
    %v135 = vld [vmem:[#allocation5 + $0x180] sm:$0xff]
    %v136 = vld [vmem:[#allocation5 + $0x188] sm:$0xff]
    %v137 = vld [vmem:[#allocation5 + $0x190] sm:$0xff]
    %v138 = vld [vmem:[#allocation5 + $0x198] sm:$0xff]
    %v139 = vld [vmem:[#allocation5 + $0x1a0] sm:$0xff]
    %v140 = vld [vmem:[#allocation5 + $0x1a8] sm:$0xff]
    %v141 = vld [vmem:[#allocation5 + $0x1b0] sm:$0xff]
    %v142 = vld [vmem:[#allocation5 + $0x1b8] sm:$0xff]
    %v143 = vld [vmem:[#allocation5 + $0x1c0] sm:$0xff]
    %v144 = vld [vmem:[#allocation5 + $0x1c8] sm:$0xff]
    %v145 = vld [vmem:[#allocation5 + $0x1d0] sm:$0xff]
    %v146 = vld [vmem:[#allocation5 + $0x1d8] sm:$0xff]
    %v147 = vld [vmem:[#allocation5 + $0x1e0] sm:$0xff]
    %v148 = vld [vmem:[#allocation5 + $0x1e8] sm:$0xff]
    %v149 = vld [vmem:[#allocation5 + $0x1f0] sm:$0xff]
    %v150 = vld [vmem:[#allocation5 + $0x1f8] sm:$0xff]
    %v151 = vld [vmem:[#allocation5 + $0x200] sm:$0xff]
    %v152 = vld [vmem:[#allocation5 + $0x208] sm:$0xff]
    %v153 = vld [vmem:[#allocation5 + $0x210] sm:$0xff]
    %v154 = vld [vmem:[#allocation5 + $0x218] sm:$0xff]
    %v155 = vld [vmem:[#allocation5 + $0x220] sm:$0xff]
    %v156 = vld [vmem:[#allocation5 + $0x228] sm:$0xff]
    %v157 = vld [vmem:[#allocation5 + $0x230] sm:$0xff]
    %v158 = vld [vmem:[#allocation5 + $0x238] sm:$0xff]
    %v159 = vld [vmem:[#allocation5 + $0x240] sm:$0xff]
    %v160 = vld [vmem:[#allocation5 + $0x248] sm:$0xff]
    %v161 = vld [vmem:[#allocation5 + $0x250] sm:$0xff]
    %v162 = vld [vmem:[#allocation5 + $0x258] sm:$0xff]
    %v163 = vld [vmem:[#allocation5 + $0x260] sm:$0xff]
    %v164 = vld [vmem:[#allocation5 + $0x268] sm:$0xff]
    %v165 = vld [vmem:[#allocation5 + $0x270] sm:$0xff]
    %v166 = vld [vmem:[#allocation5 + $0x278] sm:$0xff]
    %v167 = vld [vmem:[#allocation5 + $0x280] sm:$0xff]
    %v168 = vld [vmem:[#allocation5 + $0x288] sm:$0xff]
    %v169 = vld [vmem:[#allocation5 + $0x290] sm:$0xff]
    %v170 = vld [vmem:[#allocation5 + $0x298] sm:$0xff]
    %v171 = vld [vmem:[#allocation5 + $0x2a0] sm:$0xff]
    %v172 = vld [vmem:[#allocation5 + $0x2a8] sm:$0xff]
    %v173 = vld [vmem:[#allocation5 + $0x2b0] sm:$0xff]
    %v174 = vld [vmem:[#allocation5 + $0x2b8] sm:$0xff]
    %v175 = vld [vmem:[#allocation5 + $0x2c0] sm:$0xff]
    %v176 = vld [vmem:[#allocation5 + $0x2c8] sm:$0xff]
    %v177 = vld [vmem:[#allocation5 + $0x2d0] sm:$0xff]
    %v178 = vld [vmem:[#allocation5 + $0x2d8] sm:$0xff]
    %v179 = vld [vmem:[#allocation5 + $0x2e0] sm:$0xff]
    %v180 = vld [vmem:[#allocation5 + $0x2e8] sm:$0xff]
    %v181 = vld [vmem:[#allocation5 + $0x2f0] sm:$0xff]
    %v182 = vld [vmem:[#allocation5 + $0x2f8] sm:$0xff]
    %v183 = vld [vmem:[#allocation5 + $0x300] sm:$0xff]
    %v184 = vld [vmem:[#allocation5 + $0x308] sm:$0xff]
    %v185 = vld [vmem:[#allocation5 + $0x310] sm:$0xff]
    %v186 = vld [vmem:[#allocation5 + $0x318] sm:$0xff]
    %v187 = vld [vmem:[#allocation5 + $0x320] sm:$0xff]
    %v188 = vld [vmem:[#allocation5 + $0x328] sm:$0xff]
    %v189 = vld [vmem:[#allocation5 + $0x330] sm:$0xff]
    %v190 = vld [vmem:[#allocation5 + $0x338] sm:$0xff]
    %v191 = vld [vmem:[#allocation5 + $0x340] sm:$0xff]
    %v192 = vld [vmem:[#allocation5 + $0x348] sm:$0xff]
    %v193 = vld [vmem:[#allocation5 + $0x350] sm:$0xff]
    %v194 = vld [vmem:[#allocation5 + $0x358] sm:$0xff]
    %v195 = vld [vmem:[#allocation5 + $0x360] sm:$0xff]
    %v196 = vld [vmem:[#allocation5 + $0x368] sm:$0xff]
    %v197 = vld [vmem:[#allocation5 + $0x370] sm:$0xff]
    %v198 = vld [vmem:[#allocation5 + $0x378] sm:$0xff]
    %v199 = vld [vmem:[#allocation5 + $0x380] sm:$0xff]
    %v200 = vld [vmem:[#allocation5 + $0x388] sm:$0xff]
    %v201 = vld [vmem:[#allocation5 + $0x390] sm:$0xff]
    %v202 = vld [vmem:[#allocation5 + $0x398] sm:$0xff]
    %v203 = vld [vmem:[#allocation5 + $0x3a0] sm:$0xff]
    %v204 = vld [vmem:[#allocation5 + $0x3a8] sm:$0xff]
    %v205 = vld [vmem:[#allocation5 + $0x3b0] sm:$0xff]
    %v206 = vld [vmem:[#allocation5 + $0x3b8] sm:$0xff]
    %v207 = vld [vmem:[#allocation5 + $0x3c0] sm:$0xff]
    %v208 = vld [vmem:[#allocation5 + $0x3c8] sm:$0xff]
    %v209 = vld [vmem:[#allocation5 + $0x3d0] sm:$0xff]
    %v210 = vld [vmem:[#allocation5 + $0x3d8] sm:$0xff]
    %v211 = vld [vmem:[#allocation5 + $0x3e0] sm:$0xff]
    %v212 = vld [vmem:[#allocation5 + $0x3e8] sm:$0xff]
    %v213 = vld [vmem:[#allocation5 + $0x3f0] sm:$0xff]
    %v214 = vld [vmem:[#allocation5 + $0x3f8] sm:$0xff]
    %v215 = vld [vmem:[#allocation5 + $0x400] sm:$0xff]
    %v216 = vld [vmem:[#allocation5 + $0x408] sm:$0xff]
    %v217 = vld [vmem:[#allocation5 + $0x410] sm:$0xff]
    %v218 = vld [vmem:[#allocation5 + $0x418] sm:$0xff]
    %v219 = vld [vmem:[#allocation5 + $0x420] sm:$0xff]
    %v220 = vld [vmem:[#allocation5 + $0x428] sm:$0xff]
    %v221 = vld [vmem:[#allocation5 + $0x430] sm:$0xff]
    %v222 = vld [vmem:[#allocation5 + $0x438] sm:$0xff]
    %v223 = vld [vmem:[#allocation5 + $0x440] sm:$0xff]
    %v224 = vld [vmem:[#allocation5 + $0x448] sm:$0xff]
    %v225 = vld [vmem:[#allocation5 + $0x450] sm:$0xff]
    %v226 = vld [vmem:[#allocation5 + $0x458] sm:$0xff]
    %v227 = vld [vmem:[#allocation5 + $0x460] sm:$0xff]
    %v228 = vld [vmem:[#allocation5 + $0x468] sm:$0xff]
    %v229 = vld [vmem:[#allocation5 + $0x470] sm:$0xff]
    %v230 = vld [vmem:[#allocation5 + $0x478] sm:$0xff]
    %v231 = vld [vmem:[#allocation5 + $0x480] sm:$0xff]
    %v232 = vld [vmem:[#allocation5 + $0x488] sm:$0xff]
    %v233 = vld [vmem:[#allocation5 + $0x490] sm:$0xff]
    %v234 = vld [vmem:[#allocation5 + $0x498] sm:$0xff]
    %v235 = vld [vmem:[#allocation5 + $0x4a0] sm:$0xff]
    %v236 = vld [vmem:[#allocation5 + $0x4a8] sm:$0xff]
    %v237 = vld [vmem:[#allocation5 + $0x4b0] sm:$0xff]
    %v238 = vld [vmem:[#allocation5 + $0x4b8] sm:$0xff]
    %v239 = vld [vmem:[#allocation5 + $0x4c0] sm:$0xff]
    %v240 = vld [vmem:[#allocation5 + $0x4c8] sm:$0xff]
    %v241 = vld [vmem:[#allocation5 + $0x4d0] sm:$0xff]
    %v242 = vld [vmem:[#allocation5 + $0x4d8] sm:$0xff]
    %v243 = vld [vmem:[#allocation5 + $0x4e0] sm:$0xff]
    %v244 = vld [vmem:[#allocation5 + $0x4e8] sm:$0xff]
    %v245 = vld [vmem:[#allocation5 + $0x4f0] sm:$0xff]
    %v246 = vld [vmem:[#allocation5 + $0x4f8] sm:$0xff]
    %v247 = vld [vmem:[#allocation5 + $0x500] sm:$0xff]
    %v248 = vld [vmem:[#allocation5 + $0x508] sm:$0xff]
    %v249 = vld [vmem:[#allocation5 + $0x510] sm:$0xff]
    %v250 = vld [vmem:[#allocation5 + $0x518] sm:$0xff]
    %v251 = vld [vmem:[#allocation5 + $0x520] sm:$0xff]
    %v252 = vld [vmem:[#allocation5 + $0x528] sm:$0xff]
    %v253 = vld [vmem:[#allocation5 + $0x530] sm:$0xff]
    %v254 = vld [vmem:[#allocation5 + $0x538] sm:$0xff]
    %v255 = vld [vmem:[#allocation5 + $0x540] sm:$0xff]
    %v256 = vld [vmem:[#allocation5 + $0x548] sm:$0xff]
    %v257 = vld [vmem:[#allocation5 + $0x550] sm:$0xff]
    %v258 = vld [vmem:[#allocation5 + $0x558] sm:$0xff]
    %v259 = vld [vmem:[#allocation5 + $0x560] sm:$0xff]
    %v260 = vld [vmem:[#allocation5 + $0x568] sm:$0xff]
    %v261 = vld [vmem:[#allocation5 + $0x570] sm:$0xff]
    %v262 = vld [vmem:[#allocation5 + $0x578] sm:$0xff]
    %v263 = vld [vmem:[#allocation5 + $0x580] sm:$0xff]
    %v264 = vld [vmem:[#allocation5 + $0x588] sm:$0xff]
    %v265 = vld [vmem:[#allocation5 + $0x590] sm:$0xff]
    %v266 = vld [vmem:[#allocation5 + $0x598] sm:$0xff]
    %v267 = vld [vmem:[#allocation5 + $0x5a0] sm:$0xff]
    %v268 = vld [vmem:[#allocation5 + $0x5a8] sm:$0xff]
    %v269 = vld [vmem:[#allocation5 + $0x5b0] sm:$0xff]
    %v270 = vld [vmem:[#allocation5 + $0x5b8] sm:$0xff]
    %v271 = vld [vmem:[#allocation5 + $0x5c0] sm:$0xff]
    %v272 = vld [vmem:[#allocation5 + $0x5c8] sm:$0xff]
    %v273 = vld [vmem:[#allocation5 + $0x5d0] sm:$0xff]
    %v274 = vld [vmem:[#allocation5 + $0x5d8] sm:$0xff]
    %v275 = vld [vmem:[#allocation5 + $0x5e0] sm:$0xff]
    %v276 = vld [vmem:[#allocation5 + $0x5e8] sm:$0xff]
    %v277 = vld [vmem:[#allocation5 + $0x5f0] sm:$0xff]
    %v278 = vld [vmem:[#allocation5 + $0x5f8] sm:$0xff]
    %v279 = vld [vmem:[#allocation5 + $0x600] sm:$0xff]
    %v280 = vld [vmem:[#allocation5 + $0x608] sm:$0xff]
    %v281 = vld [vmem:[#allocation5 + $0x610] sm:$0xff]
    %v282 = vld [vmem:[#allocation5 + $0x618] sm:$0xff]
    %v283 = vld [vmem:[#allocation5 + $0x620] sm:$0xff]
    %v284 = vld [vmem:[#allocation5 + $0x628] sm:$0xff]
    %v285 = vld [vmem:[#allocation5 + $0x630] sm:$0xff]
    %v286 = vld [vmem:[#allocation5 + $0x638] sm:$0xff]
    %v287 = vld [vmem:[#allocation5 + $0x640] sm:$0xff]
    %v288 = vld [vmem:[#allocation5 + $0x648] sm:$0xff]
    %v289 = vld [vmem:[#allocation5 + $0x650] sm:$0xff]
    %v290 = vld [vmem:[#allocation5 + $0x658] sm:$0xff]
    %v291 = vld [vmem:[#allocation5 + $0x660] sm:$0xff]
    %v292 = vld [vmem:[#allocation5 + $0x668] sm:$0xff]
    %v293 = vld [vmem:[#allocation5 + $0x670] sm:$0xff]
    %v294 = vld [vmem:[#allocation5 + $0x678] sm:$0xff]
    %v295 = vld [vmem:[#allocation5 + $0x680] sm:$0xff]
    %v296 = vld [vmem:[#allocation5 + $0x688] sm:$0xff]
    %v297 = vld [vmem:[#allocation5 + $0x690] sm:$0xff]
    %v298 = vld [vmem:[#allocation5 + $0x698] sm:$0xff]
    %v299 = vld [vmem:[#allocation5 + $0x6a0] sm:$0xff]
    %v300 = vld [vmem:[#allocation5 + $0x6a8] sm:$0xff]
    %v301 = vld [vmem:[#allocation5 + $0x6b0] sm:$0xff]
    %v302 = vld [vmem:[#allocation5 + $0x6b8] sm:$0xff]
    %v303 = vld [vmem:[#allocation5 + $0x6c0] sm:$0xff]
    %v304 = vld [vmem:[#allocation5 + $0x6c8] sm:$0xff]
    %v305 = vld [vmem:[#allocation5 + $0x6d0] sm:$0xff]
    %v306 = vld [vmem:[#allocation5 + $0x6d8] sm:$0xff]
    %v307 = vld [vmem:[#allocation5 + $0x6e0] sm:$0xff]
    %v308 = vld [vmem:[#allocation5 + $0x6e8] sm:$0xff]
    %v309 = vld [vmem:[#allocation5 + $0x6f0] sm:$0xff]
    %v310 = vld [vmem:[#allocation5 + $0x6f8] sm:$0xff]
    %v311 = vld [vmem:[#allocation5 + $0x700] sm:$0xff]
    %v312 = vld [vmem:[#allocation5 + $0x708] sm:$0xff]
    %v313 = vld [vmem:[#allocation5 + $0x710] sm:$0xff]
    %v314 = vld [vmem:[#allocation5 + $0x718] sm:$0xff]
    %v315 = vld [vmem:[#allocation5 + $0x720] sm:$0xff]
    %v316 = vld [vmem:[#allocation5 + $0x728] sm:$0xff]
    %v317 = vld [vmem:[#allocation5 + $0x730] sm:$0xff]
    %v318 = vld [vmem:[#allocation5 + $0x738] sm:$0xff]
    %v319 = vld [vmem:[#allocation5 + $0x740] sm:$0xff]
    %v320 = vld [vmem:[#allocation5 + $0x748] sm:$0xff]
    %v321 = vld [vmem:[#allocation5 + $0x750] sm:$0xff]
    %v322 = vld [vmem:[#allocation5 + $0x758] sm:$0xff]
    %v323 = vld [vmem:[#allocation5 + $0x760] sm:$0xff]
    %v324 = vld [vmem:[#allocation5 + $0x768] sm:$0xff]
    %v325 = vld [vmem:[#allocation5 + $0x770] sm:$0xff]
    %v326 = vld [vmem:[#allocation5 + $0x778] sm:$0xff]
    %v327 = vld [vmem:[#allocation5 + $0x780] sm:$0xff]
    %v328 = vld [vmem:[#allocation5 + $0x788] sm:$0xff]
    %v329 = vld [vmem:[#allocation5 + $0x790] sm:$0xff]
    %v330 = vld [vmem:[#allocation5 + $0x798] sm:$0xff]
    %v331 = vld [vmem:[#allocation5 + $0x7a0] sm:$0xff]
    %v332 = vld [vmem:[#allocation5 + $0x7a8] sm:$0xff]
    %v333 = vld [vmem:[#allocation5 + $0x7b0] sm:$0xff]
    %v334 = vld [vmem:[#allocation5 + $0x7b8] sm:$0xff]
    %v335 = vld [vmem:[#allocation5 + $0x7c0] sm:$0xff]
    %v336 = vld [vmem:[#allocation5 + $0x7c8] sm:$0xff]
    %v337 = vld [vmem:[#allocation5 + $0x7d0] sm:$0xff]
    %v338 = vld [vmem:[#allocation5 + $0x7d8] sm:$0xff]
    %v339 = vld [vmem:[#allocation5 + $0x7e0] sm:$0xff]
    %v340 = vld [vmem:[#allocation5 + $0x7e8] sm:$0xff]
    %v341 = vld [vmem:[#allocation5 + $0x7f0] sm:$0xff]
    %v342 = vld [vmem:[#allocation5 + $0x7f8] sm:$0xff]
    %v343 = vld [vmem:[#allocation5 + $0x800] sm:$0xff]
    %v344 = vld [vmem:[#allocation5 + $0x808] sm:$0xff]
    %v345 = vld [vmem:[#allocation5 + $0x810] sm:$0xff]
    %v346 = vld [vmem:[#allocation5 + $0x818] sm:$0xff]
    %v347 = vld [vmem:[#allocation7] sm:$0xff]
    %v348 = vld [vmem:[#allocation7 + $0x8] sm:$0xff]
    %v349 = vld [vmem:[#allocation7 + $0x10] sm:$0xff]
    %v350 = vld [vmem:[#allocation7 + $0x18] sm:$0xff]
    %v351 = vld [vmem:[#allocation7 + $0x20] sm:$0xff]
    %v352 = vld [vmem:[#allocation7 + $0x28] sm:$0xff]
    %v353 = vld [vmem:[#allocation7 + $0x30] sm:$0xff]
    %v354 = vld [vmem:[#allocation7 + $0x38] sm:$0xff]
    %v355 = vld [vmem:[#allocation7 + $0x40] sm:$0xff]
    %v356 = vld [vmem:[#allocation7 + $0x48] sm:$0xff]
    %v357 = vld [vmem:[#allocation7 + $0x50] sm:$0xff]
    %v358 = vld [vmem:[#allocation7 + $0x58] sm:$0xff]
    %v359 = vld [vmem:[#allocation7 + $0x60] sm:$0xff]
    %v360 = vld [vmem:[#allocation7 + $0x68] sm:$0xff]
    %v361 = vld [vmem:[#allocation7 + $0x70] sm:$0xff]
    %v362 = vld [vmem:[#allocation7 + $0x78] sm:$0xff]
    %v363 = vld [vmem:[#allocation7 + $0x80] sm:$0xff]
    %v364 = vld [vmem:[#allocation7 + $0x88] sm:$0xff]
    %v365 = vld [vmem:[#allocation7 + $0x90] sm:$0xff]
    %v366 = vld [vmem:[#allocation7 + $0x98] sm:$0xff]
    %v367 = vld [vmem:[#allocation7 + $0xa0] sm:$0xff]
    %v368 = vld [vmem:[#allocation7 + $0xa8] sm:$0xff]
    %v369 = vld [vmem:[#allocation7 + $0xb0] sm:$0xff]
    %v370 = vld [vmem:[#allocation7 + $0xb8] sm:$0xff]
    %v371 = vld [vmem:[#allocation7 + $0xc0] sm:$0xff]
    %v372 = vld [vmem:[#allocation7 + $0xc8] sm:$0xff]
    %v373 = vld [vmem:[#allocation7 + $0xd0] sm:$0xff]
    %v374 = vld [vmem:[#allocation7 + $0xd8] sm:$0xff]
    %v375 = vld [vmem:[#allocation7 + $0xe0] sm:$0xff]
    %v376 = vld [vmem:[#allocation7 + $0xe8] sm:$0xff]
    %v377 = vld [vmem:[#allocation7 + $0xf0] sm:$0xff]
    %v378 = vld [vmem:[#allocation7 + $0xf8] sm:$0xff]
    %v379 = vld [vmem:[#allocation3] sm:$0xff]
    %v380 = vld [vmem:[#allocation3 + $0x8] sm:$0xff]
    %v381 = vpack.c.bf16 %v380, %v379
    %v386 = vunpack.c.l.b16 %v87
    %v387 = vunpack.c.h.b16 %v87
    %v388 = vunpack.c.l.b16 %v88
    %v389 = vunpack.c.h.b16 %v88
    %v390 = vunpack.c.l.b16 %v89
    %v391 = vunpack.c.h.b16 %v89
    %v392 = vunpack.c.l.b16 %v90
    %v393 = vunpack.c.h.b16 %v90
    %v394 = vpack.c.b16 %v390, %v386
    %v395 = vpack.c.b16 %v391, %v387
    %v396 = vpack.c.b16 %v392, %v388
    %v397 = vpack.c.b16 %v393, %v389
    %vm402 = vcmask 130048
    %v404 = vsel %vm402, %v381, 0
    %406 = vmatpush.bf16.msra.mxu0 0
    %407 = vmatpush.bf16.msra.mxu0 0
    %408 = vmatpush.bf16.msra.mxu0 0
    %409 = vmatpush.bf16.msra.mxu0 0
    %410 = vmatpush.bf16.msra.mxu0 0
    %411 = vmatpush.bf16.msra.mxu0 0
    %412 = vmatpush.bf16.msra.mxu0 0
    %413 = vmatpush.bf16.msra.mxu0 %v394
    %414 = vmatmul.bf16.gmra.mxu0 %v404
    %v415 = vpop.f32.mrf.mxu0
    %v416 = vadd.f32 %v347, %v415
    %v417 = vpop.f32.mrf.mxu0
    %v418 = vadd.f32 %v351, %v417
    %419 = vdwg.mxu0
    %420 = vmatpush.bf16.msra.mxu0 0
    %421 = vmatpush.bf16.msra.mxu0 0
    %422 = vmatpush.bf16.msra.mxu0 0
    %423 = vmatpush.bf16.msra.mxu0 0
    %424 = vmatpush.bf16.msra.mxu0 0
    %425 = vmatpush.bf16.msra.mxu0 0
    %426 = vmatpush.bf16.msra.mxu0 0
    %427 = vmatpush.bf16.msra.mxu0 %v395
    %428 = vmatmul.bf16.gmra.mxu0 %v404
    %v429 = vpop.f32.mrf.mxu0
    %v430 = vadd.f32 %v348, %v429
    %v431 = vpop.f32.mrf.mxu0
    %v432 = vadd.f32 %v352, %v431
    %433 = vdwg.mxu0
    %434 = vmatpush.bf16.msra.mxu0 0
    %435 = vmatpush.bf16.msra.mxu0 0
    %436 = vmatpush.bf16.msra.mxu0 0
    %437 = vmatpush.bf16.msra.mxu0 0
    %438 = vmatpush.bf16.msra.mxu0 0
    %439 = vmatpush.bf16.msra.mxu0 0
    %440 = vmatpush.bf16.msra.mxu0 0
    %441 = vmatpush.bf16.msra.mxu0 %v396
    %442 = vmatmul.bf16.gmra.mxu0 %v404
    %v443 = vpop.f32.mrf.mxu0
    %v444 = vadd.f32 %v349, %v443
    %v445 = vpop.f32.mrf.mxu0
    %v446 = vadd.f32 %v353, %v445
    %447 = vdwg.mxu0
    %448 = vmatpush.bf16.msra.mxu0 0
    %449 = vmatpush.bf16.msra.mxu0 0
    %450 = vmatpush.bf16.msra.mxu0 0
    %451 = vmatpush.bf16.msra.mxu0 0
    %452 = vmatpush.bf16.msra.mxu0 0
    %453 = vmatpush.bf16.msra.mxu0 0
    %454 = vmatpush.bf16.msra.mxu0 0
    %455 = vmatpush.bf16.msra.mxu0 %v397
    %456 = vmatmul.bf16.gmra.mxu0 %v404
    %v457 = vpop.f32.mrf.mxu0
    %v458 = vadd.f32 %v350, %v457
    %v459 = vpop.f32.mrf.mxu0
    %v460 = vadd.f32 %v354, %v459
    %461 = vdwg.mxu0
    %v462 = vmax.f32 %v416, 0.0
    %v463 = vmax.f32 %v430, 0.0
    %v464 = vmax.f32 %v444, 0.0
    %v465 = vmax.f32 %v458, 0.0
    %v466 = vmax.f32 %v418, 0.0
    %v467 = vmax.f32 %v432, 0.0
    %v468 = vmax.f32 %v446, 0.0
    %v469 = vmax.f32 %v460, 0.0
    %v470 = vpack.c.bf16 %v466, %v462
    %v471 = vpack.c.bf16 %v467, %v463
    %v472 = vpack.c.bf16 %v468, %v464
    %v473 = vpack.c.bf16 %v469, %v465
    %v602 = vunpack.c.l.b16 %v91
    %v603 = vunpack.c.h.b16 %v91
    %v604 = vunpack.c.l.b16 %v92
    %v605 = vunpack.c.h.b16 %v92
    %v606 = vunpack.c.l.b16 %v93
    %v607 = vunpack.c.h.b16 %v93
    %v608 = vunpack.c.l.b16 %v94
    %v609 = vunpack.c.h.b16 %v94
    %v610 = vunpack.c.l.b16 %v95
    %v611 = vunpack.c.h.b16 %v95
    %v612 = vunpack.c.l.b16 %v96
    %v613 = vunpack.c.h.b16 %v96
    %v614 = vunpack.c.l.b16 %v97
    %v615 = vunpack.c.h.b16 %v97
    %v616 = vunpack.c.l.b16 %v98
    %v617 = vunpack.c.h.b16 %v98
    %v618 = vunpack.c.l.b16 %v99
    %v619 = vunpack.c.h.b16 %v99
    %v620 = vunpack.c.l.b16 %v100
    %v621 = vunpack.c.h.b16 %v100
    %v622 = vunpack.c.l.b16 %v101
    %v623 = vunpack.c.h.b16 %v101
    %v624 = vunpack.c.l.b16 %v102
    %v625 = vunpack.c.h.b16 %v102
    %v626 = vunpack.c.l.b16 %v103
    %v627 = vunpack.c.h.b16 %v103
    %v628 = vunpack.c.l.b16 %v104
    %v629 = vunpack.c.h.b16 %v104
    %v630 = vunpack.c.l.b16 %v105
    %v631 = vunpack.c.h.b16 %v105
    %v632 = vunpack.c.l.b16 %v106
    %v633 = vunpack.c.h.b16 %v106
    %v634 = vunpack.c.l.b16 %v107
    %v635 = vunpack.c.h.b16 %v107
    %v636 = vunpack.c.l.b16 %v108
    %v637 = vunpack.c.h.b16 %v108
    %v638 = vunpack.c.l.b16 %v109
    %v639 = vunpack.c.h.b16 %v109
    %v640 = vunpack.c.l.b16 %v110
    %v641 = vunpack.c.h.b16 %v110
    %v642 = vunpack.c.l.b16 %v111
    %v643 = vunpack.c.h.b16 %v111
    %v644 = vunpack.c.l.b16 %v112
    %v645 = vunpack.c.h.b16 %v112
    %v646 = vunpack.c.l.b16 %v113
    %v647 = vunpack.c.h.b16 %v113
    %v648 = vunpack.c.l.b16 %v114
    %v649 = vunpack.c.h.b16 %v114
    %v650 = vunpack.c.l.b16 %v115
    %v651 = vunpack.c.h.b16 %v115
    %v652 = vunpack.c.l.b16 %v116
    %v653 = vunpack.c.h.b16 %v116
    %v654 = vunpack.c.l.b16 %v117
    %v655 = vunpack.c.h.b16 %v117
    %v656 = vunpack.c.l.b16 %v118
    %v657 = vunpack.c.h.b16 %v118
    %v658 = vunpack.c.l.b16 %v119
    %v659 = vunpack.c.h.b16 %v119
    %v660 = vunpack.c.l.b16 %v120
    %v661 = vunpack.c.h.b16 %v120
    %v662 = vunpack.c.l.b16 %v121
    %v663 = vunpack.c.h.b16 %v121
    %v664 = vunpack.c.l.b16 %v122
    %v665 = vunpack.c.h.b16 %v122
    %v666 = vunpack.c.l.b16 %v123
    %v667 = vunpack.c.h.b16 %v123
    %v668 = vunpack.c.l.b16 %v124
    %v669 = vunpack.c.h.b16 %v124
    %v670 = vunpack.c.l.b16 %v125
    %v671 = vunpack.c.h.b16 %v125
    %v672 = vunpack.c.l.b16 %v126
    %v673 = vunpack.c.h.b16 %v126
    %v674 = vunpack.c.l.b16 %v127
    %v675 = vunpack.c.h.b16 %v127
    %v676 = vunpack.c.l.b16 %v128
    %v677 = vunpack.c.h.b16 %v128
    %v678 = vunpack.c.l.b16 %v129
    %v679 = vunpack.c.h.b16 %v129
    %v680 = vunpack.c.l.b16 %v130
    %v681 = vunpack.c.h.b16 %v130
    %v682 = vunpack.c.l.b16 %v131
    %v683 = vunpack.c.h.b16 %v131
    %v684 = vunpack.c.l.b16 %v132
    %v685 = vunpack.c.h.b16 %v132
    %v686 = vunpack.c.l.b16 %v133
    %v687 = vunpack.c.h.b16 %v133
    %v688 = vunpack.c.l.b16 %v134
    %v689 = vunpack.c.h.b16 %v134
    %v690 = vunpack.c.l.b16 %v135
    %v691 = vunpack.c.h.b16 %v135
    %v692 = vunpack.c.l.b16 %v136
    %v693 = vunpack.c.h.b16 %v136
    %v694 = vunpack.c.l.b16 %v137
    %v695 = vunpack.c.h.b16 %v137
    %v696 = vunpack.c.l.b16 %v138
    %v697 = vunpack.c.h.b16 %v138
    %v698 = vunpack.c.l.b16 %v139
    %v699 = vunpack.c.h.b16 %v139
    %v700 = vunpack.c.l.b16 %v140
    %v701 = vunpack.c.h.b16 %v140
    %v702 = vunpack.c.l.b16 %v141
    %v703 = vunpack.c.h.b16 %v141
    %v704 = vunpack.c.l.b16 %v142
    %v705 = vunpack.c.h.b16 %v142
    %v706 = vunpack.c.l.b16 %v143
    %v707 = vunpack.c.h.b16 %v143
    %v708 = vunpack.c.l.b16 %v144
    %v709 = vunpack.c.h.b16 %v144
    %v710 = vunpack.c.l.b16 %v145
    %v711 = vunpack.c.h.b16 %v145
    %v712 = vunpack.c.l.b16 %v146
    %v713 = vunpack.c.h.b16 %v146
    %v714 = vunpack.c.l.b16 %v147
    %v715 = vunpack.c.h.b16 %v147
    %v716 = vunpack.c.l.b16 %v148
    %v717 = vunpack.c.h.b16 %v148
    %v718 = vunpack.c.l.b16 %v149
    %v719 = vunpack.c.h.b16 %v149
    %v720 = vunpack.c.l.b16 %v150
    %v721 = vunpack.c.h.b16 %v150
    %v722 = vunpack.c.l.b16 %v151
    %v723 = vunpack.c.h.b16 %v151
    %v724 = vunpack.c.l.b16 %v152
    %v725 = vunpack.c.h.b16 %v152
    %v726 = vunpack.c.l.b16 %v153
    %v727 = vunpack.c.h.b16 %v153
    %v728 = vunpack.c.l.b16 %v154
    %v729 = vunpack.c.h.b16 %v154
    %v730 = vunpack.c.l.b16 %v155
    %v731 = vunpack.c.h.b16 %v155
    %v732 = vunpack.c.l.b16 %v156
    %v733 = vunpack.c.h.b16 %v156
    %v734 = vunpack.c.l.b16 %v157
    %v735 = vunpack.c.h.b16 %v157
    %v736 = vunpack.c.l.b16 %v158
    %v737 = vunpack.c.h.b16 %v158
    %v738 = vunpack.c.l.b16 %v159
    %v739 = vunpack.c.h.b16 %v159
    %v740 = vunpack.c.l.b16 %v160
    %v741 = vunpack.c.h.b16 %v160
    %v742 = vunpack.c.l.b16 %v161
    %v743 = vunpack.c.h.b16 %v161
    %v744 = vunpack.c.l.b16 %v162
    %v745 = vunpack.c.h.b16 %v162
    %v746 = vunpack.c.l.b16 %v163
    %v747 = vunpack.c.h.b16 %v163
    %v748 = vunpack.c.l.b16 %v164
    %v749 = vunpack.c.h.b16 %v164
    %v750 = vunpack.c.l.b16 %v165
    %v751 = vunpack.c.h.b16 %v165
    %v752 = vunpack.c.l.b16 %v166
    %v753 = vunpack.c.h.b16 %v166
    %v754 = vunpack.c.l.b16 %v167
    %v755 = vunpack.c.h.b16 %v167
    %v756 = vunpack.c.l.b16 %v168
    %v757 = vunpack.c.h.b16 %v168
    %v758 = vunpack.c.l.b16 %v169
    %v759 = vunpack.c.h.b16 %v169
    %v760 = vunpack.c.l.b16 %v170
    %v761 = vunpack.c.h.b16 %v170
    %v762 = vunpack.c.l.b16 %v171
    %v763 = vunpack.c.h.b16 %v171
    %v764 = vunpack.c.l.b16 %v172
    %v765 = vunpack.c.h.b16 %v172
    %v766 = vunpack.c.l.b16 %v173
    %v767 = vunpack.c.h.b16 %v173
    %v768 = vunpack.c.l.b16 %v174
    %v769 = vunpack.c.h.b16 %v174
    %v770 = vunpack.c.l.b16 %v175
    %v771 = vunpack.c.h.b16 %v175
    %v772 = vunpack.c.l.b16 %v176
    %v773 = vunpack.c.h.b16 %v176
    %v774 = vunpack.c.l.b16 %v177
    %v775 = vunpack.c.h.b16 %v177
    %v776 = vunpack.c.l.b16 %v178
    %v777 = vunpack.c.h.b16 %v178
    %v778 = vunpack.c.l.b16 %v179
    %v779 = vunpack.c.h.b16 %v179
    %v780 = vunpack.c.l.b16 %v180
    %v781 = vunpack.c.h.b16 %v180
    %v782 = vunpack.c.l.b16 %v181
    %v783 = vunpack.c.h.b16 %v181
    %v784 = vunpack.c.l.b16 %v182
    %v785 = vunpack.c.h.b16 %v182
    %v786 = vunpack.c.l.b16 %v183
    %v787 = vunpack.c.h.b16 %v183
    %v788 = vunpack.c.l.b16 %v184
    %v789 = vunpack.c.h.b16 %v184
    %v790 = vunpack.c.l.b16 %v185
    %v791 = vunpack.c.h.b16 %v185
    %v792 = vunpack.c.l.b16 %v186
    %v793 = vunpack.c.h.b16 %v186
    %v794 = vunpack.c.l.b16 %v187
    %v795 = vunpack.c.h.b16 %v187
    %v796 = vunpack.c.l.b16 %v188
    %v797 = vunpack.c.h.b16 %v188
    %v798 = vunpack.c.l.b16 %v189
    %v799 = vunpack.c.h.b16 %v189
    %v800 = vunpack.c.l.b16 %v190
    %v801 = vunpack.c.h.b16 %v190
    %v802 = vunpack.c.l.b16 %v191
    %v803 = vunpack.c.h.b16 %v191
    %v804 = vunpack.c.l.b16 %v192
    %v805 = vunpack.c.h.b16 %v192
    %v806 = vunpack.c.l.b16 %v193
    %v807 = vunpack.c.h.b16 %v193
    %v808 = vunpack.c.l.b16 %v194
    %v809 = vunpack.c.h.b16 %v194
    %v810 = vunpack.c.l.b16 %v195
    %v811 = vunpack.c.h.b16 %v195
    %v812 = vunpack.c.l.b16 %v196
    %v813 = vunpack.c.h.b16 %v196
    %v814 = vunpack.c.l.b16 %v197
    %v815 = vunpack.c.h.b16 %v197
    %v816 = vunpack.c.l.b16 %v198
    %v817 = vunpack.c.h.b16 %v198
    %v818 = vunpack.c.l.b16 %v199
    %v819 = vunpack.c.h.b16 %v199
    %v820 = vunpack.c.l.b16 %v200
    %v821 = vunpack.c.h.b16 %v200
    %v822 = vunpack.c.l.b16 %v201
    %v823 = vunpack.c.h.b16 %v201
    %v824 = vunpack.c.l.b16 %v202
    %v825 = vunpack.c.h.b16 %v202
    %v826 = vunpack.c.l.b16 %v203
    %v827 = vunpack.c.h.b16 %v203
    %v828 = vunpack.c.l.b16 %v204
    %v829 = vunpack.c.h.b16 %v204
    %v830 = vunpack.c.l.b16 %v205
    %v831 = vunpack.c.h.b16 %v205
    %v832 = vunpack.c.l.b16 %v206
    %v833 = vunpack.c.h.b16 %v206
    %v834 = vunpack.c.l.b16 %v207
    %v835 = vunpack.c.h.b16 %v207
    %v836 = vunpack.c.l.b16 %v208
    %v837 = vunpack.c.h.b16 %v208
    %v838 = vunpack.c.l.b16 %v209
    %v839 = vunpack.c.h.b16 %v209
    %v840 = vunpack.c.l.b16 %v210
    %v841 = vunpack.c.h.b16 %v210
    %v842 = vunpack.c.l.b16 %v211
    %v843 = vunpack.c.h.b16 %v211
    %v844 = vunpack.c.l.b16 %v212
    %v845 = vunpack.c.h.b16 %v212
    %v846 = vunpack.c.l.b16 %v213
    %v847 = vunpack.c.h.b16 %v213
    %v848 = vunpack.c.l.b16 %v214
    %v849 = vunpack.c.h.b16 %v214
    %v850 = vunpack.c.l.b16 %v215
    %v851 = vunpack.c.h.b16 %v215
    %v852 = vunpack.c.l.b16 %v216
    %v853 = vunpack.c.h.b16 %v216
    %v854 = vunpack.c.l.b16 %v217
    %v855 = vunpack.c.h.b16 %v217
    %v856 = vunpack.c.l.b16 %v218
    %v857 = vunpack.c.h.b16 %v218
    %v858 = vpack.c.b16 %v606, %v602
    %v859 = vpack.c.b16 %v607, %v603
    %v860 = vpack.c.b16 %v608, %v604
    %v861 = vpack.c.b16 %v609, %v605
    %v862 = vpack.c.b16 %v614, %v610
    %v863 = vpack.c.b16 %v615, %v611
    %v864 = vpack.c.b16 %v616, %v612
    %v865 = vpack.c.b16 %v617, %v613
    %v866 = vpack.c.b16 %v622, %v618
    %v867 = vpack.c.b16 %v623, %v619
    %v868 = vpack.c.b16 %v624, %v620
    %v869 = vpack.c.b16 %v625, %v621
    %v870 = vpack.c.b16 %v630, %v626
    %v871 = vpack.c.b16 %v631, %v627
    %v872 = vpack.c.b16 %v632, %v628
    %v873 = vpack.c.b16 %v633, %v629
    %v874 = vpack.c.b16 %v638, %v634
    %v875 = vpack.c.b16 %v639, %v635
    %v876 = vpack.c.b16 %v640, %v636
    %v877 = vpack.c.b16 %v641, %v637
    %v878 = vpack.c.b16 %v646, %v642
    %v879 = vpack.c.b16 %v647, %v643
    %v880 = vpack.c.b16 %v648, %v644
    %v881 = vpack.c.b16 %v649, %v645
    %v882 = vpack.c.b16 %v654, %v650
    %v883 = vpack.c.b16 %v655, %v651
    %v884 = vpack.c.b16 %v656, %v652
    %v885 = vpack.c.b16 %v657, %v653
    %v886 = vpack.c.b16 %v662, %v658
    %v887 = vpack.c.b16 %v663, %v659
    %v888 = vpack.c.b16 %v664, %v660
    %v889 = vpack.c.b16 %v665, %v661
    %v890 = vpack.c.b16 %v670, %v666
    %v891 = vpack.c.b16 %v671, %v667
    %v892 = vpack.c.b16 %v672, %v668
    %v893 = vpack.c.b16 %v673, %v669
    %v894 = vpack.c.b16 %v678, %v674
    %v895 = vpack.c.b16 %v679, %v675
    %v896 = vpack.c.b16 %v680, %v676
    %v897 = vpack.c.b16 %v681, %v677
    %v898 = vpack.c.b16 %v686, %v682
    %v899 = vpack.c.b16 %v687, %v683
    %v900 = vpack.c.b16 %v688, %v684
    %v901 = vpack.c.b16 %v689, %v685
    %v902 = vpack.c.b16 %v694, %v690
    %v903 = vpack.c.b16 %v695, %v691
    %v904 = vpack.c.b16 %v696, %v692
    %v905 = vpack.c.b16 %v697, %v693
    %v906 = vpack.c.b16 %v702, %v698
    %v907 = vpack.c.b16 %v703, %v699
    %v908 = vpack.c.b16 %v704, %v700
    %v909 = vpack.c.b16 %v705, %v701
    %v910 = vpack.c.b16 %v710, %v706
    %v911 = vpack.c.b16 %v711, %v707
    %v912 = vpack.c.b16 %v712, %v708
    %v913 = vpack.c.b16 %v713, %v709
    %v914 = vpack.c.b16 %v718, %v714
    %v915 = vpack.c.b16 %v719, %v715
    %v916 = vpack.c.b16 %v720, %v716
    %v917 = vpack.c.b16 %v721, %v717
    %v918 = vpack.c.b16 %v726, %v722
    %v919 = vpack.c.b16 %v727, %v723
    %v920 = vpack.c.b16 %v728, %v724
    %v921 = vpack.c.b16 %v729, %v725
    %v922 = vpack.c.b16 %v734, %v730
    %v923 = vpack.c.b16 %v735, %v731
    %v924 = vpack.c.b16 %v736, %v732
    %v925 = vpack.c.b16 %v737, %v733
    %v926 = vpack.c.b16 %v742, %v738
    %v927 = vpack.c.b16 %v743, %v739
    %v928 = vpack.c.b16 %v744, %v740
    %v929 = vpack.c.b16 %v745, %v741
    %v930 = vpack.c.b16 %v750, %v746
    %v931 = vpack.c.b16 %v751, %v747
    %v932 = vpack.c.b16 %v752, %v748
    %v933 = vpack.c.b16 %v753, %v749
    %v934 = vpack.c.b16 %v758, %v754
    %v935 = vpack.c.b16 %v759, %v755
    %v936 = vpack.c.b16 %v760, %v756
    %v937 = vpack.c.b16 %v761, %v757
    %v938 = vpack.c.b16 %v766, %v762
    %v939 = vpack.c.b16 %v767, %v763
    %v940 = vpack.c.b16 %v768, %v764
    %v941 = vpack.c.b16 %v769, %v765
    %v942 = vpack.c.b16 %v774, %v770
    %v943 = vpack.c.b16 %v775, %v771
    %v944 = vpack.c.b16 %v776, %v772
    %v945 = vpack.c.b16 %v777, %v773
    %v946 = vpack.c.b16 %v782, %v778
    %v947 = vpack.c.b16 %v783, %v779
    %v948 = vpack.c.b16 %v784, %v780
    %v949 = vpack.c.b16 %v785, %v781
    %v950 = vpack.c.b16 %v790, %v786
    %v951 = vpack.c.b16 %v791, %v787
    %v952 = vpack.c.b16 %v792, %v788
    %v953 = vpack.c.b16 %v793, %v789
    %v954 = vpack.c.b16 %v798, %v794
    %v955 = vpack.c.b16 %v799, %v795
    %v956 = vpack.c.b16 %v800, %v796
    %v957 = vpack.c.b16 %v801, %v797
    %v958 = vpack.c.b16 %v806, %v802
    %v959 = vpack.c.b16 %v807, %v803
    %v960 = vpack.c.b16 %v808, %v804
    %v961 = vpack.c.b16 %v809, %v805
    %v962 = vpack.c.b16 %v814, %v810
    %v963 = vpack.c.b16 %v815, %v811
    %v964 = vpack.c.b16 %v816, %v812
    %v965 = vpack.c.b16 %v817, %v813
    %v966 = vpack.c.b16 %v822, %v818
    %v967 = vpack.c.b16 %v823, %v819
    %v968 = vpack.c.b16 %v824, %v820
    %v969 = vpack.c.b16 %v825, %v821
    %v970 = vpack.c.b16 %v830, %v826
    %v971 = vpack.c.b16 %v831, %v827
    %v972 = vpack.c.b16 %v832, %v828
    %v973 = vpack.c.b16 %v833, %v829
    %v974 = vpack.c.b16 %v838, %v834
    %v975 = vpack.c.b16 %v839, %v835
    %v976 = vpack.c.b16 %v840, %v836
    %v977 = vpack.c.b16 %v841, %v837
    %v978 = vpack.c.b16 %v846, %v842
    %v979 = vpack.c.b16 %v847, %v843
    %v980 = vpack.c.b16 %v848, %v844
    %v981 = vpack.c.b16 %v849, %v845
    %v982 = vpack.c.b16 %v854, %v850
    %v983 = vpack.c.b16 %v855, %v851
    %v984 = vpack.c.b16 %v856, %v852
    %v985 = vpack.c.b16 %v857, %v853
    %1114 = vmatpush.bf16.msra.mxu0 %v886
    %1115 = vmatpush.bf16.msra.mxu0 %v882
    %1116 = vmatpush.bf16.msra.mxu0 %v878
    %1117 = vmatpush.bf16.msra.mxu0 %v874
    %1118 = vmatpush.bf16.msra.mxu0 %v870
    %1119 = vmatpush.bf16.msra.mxu0 %v866
    %1120 = vmatpush.bf16.msra.mxu0 %v862
    %1121 = vmatpush.bf16.msra.mxu0 %v858
    %1122 = vmatmul.bf16.gmra.mxu0 %v470
    %v1123 = vpop.f32.mrf.mxu0
    %v1124 = vadd.f32 0.0, %v1123
    %v1125 = vpop.f32.mrf.mxu0
    %v1126 = vadd.f32 0.0, %v1125
    %1127 = vdwg.mxu0
    %1128 = vmatpush.bf16.msra.mxu0 %v918
    %1129 = vmatpush.bf16.msra.mxu0 %v914
    %1130 = vmatpush.bf16.msra.mxu0 %v910
    %1131 = vmatpush.bf16.msra.mxu0 %v906
    %1132 = vmatpush.bf16.msra.mxu0 %v902
    %1133 = vmatpush.bf16.msra.mxu0 %v898
    %1134 = vmatpush.bf16.msra.mxu0 %v894
    %1135 = vmatpush.bf16.msra.mxu0 %v890
    %1136 = vmatmul.bf16.gmra.mxu0 %v471
    %v1137 = vpop.f32.mrf.mxu0
    %v1138 = vadd.f32 %v1124, %v1137
    %v1139 = vpop.f32.mrf.mxu0
    %v1140 = vadd.f32 %v1126, %v1139
    %1141 = vdwg.mxu0
    %1142 = vmatpush.bf16.msra.mxu0 %v950
    %1143 = vmatpush.bf16.msra.mxu0 %v946
    %1144 = vmatpush.bf16.msra.mxu0 %v942
    %1145 = vmatpush.bf16.msra.mxu0 %v938
    %1146 = vmatpush.bf16.msra.mxu0 %v934
    %1147 = vmatpush.bf16.msra.mxu0 %v930
    %1148 = vmatpush.bf16.msra.mxu0 %v926
    %1149 = vmatpush.bf16.msra.mxu0 %v922
    %1150 = vmatmul.bf16.gmra.mxu0 %v472
    %v1151 = vpop.f32.mrf.mxu0
    %v1152 = vadd.f32 %v1138, %v1151
    %v1153 = vpop.f32.mrf.mxu0
    %v1154 = vadd.f32 %v1140, %v1153
    %1155 = vdwg.mxu0
    %1156 = vmatpush.bf16.msra.mxu0 %v982
    %1157 = vmatpush.bf16.msra.mxu0 %v978
    %1158 = vmatpush.bf16.msra.mxu0 %v974
    %1159 = vmatpush.bf16.msra.mxu0 %v970
    %1160 = vmatpush.bf16.msra.mxu0 %v966
    %1161 = vmatpush.bf16.msra.mxu0 %v962
    %1162 = vmatpush.bf16.msra.mxu0 %v958
    %1163 = vmatpush.bf16.msra.mxu0 %v954
    %1164 = vmatmul.bf16.gmra.mxu0 %v473
    %v1165 = vpop.f32.mrf.mxu0
    %v1166 = vadd.f32 %v1152, %v1165
    %v1167 = vpop.f32.mrf.mxu0
    %v1168 = vadd.f32 %v1154, %v1167
    %1169 = vdwg.mxu0
    %1170 = vmatpush.bf16.msra.mxu0 %v887
    %1171 = vmatpush.bf16.msra.mxu0 %v883
    %1172 = vmatpush.bf16.msra.mxu0 %v879
    %1173 = vmatpush.bf16.msra.mxu0 %v875
    %1174 = vmatpush.bf16.msra.mxu0 %v871
    %1175 = vmatpush.bf16.msra.mxu0 %v867
    %1176 = vmatpush.bf16.msra.mxu0 %v863
    %1177 = vmatpush.bf16.msra.mxu0 %v859
    %1178 = vmatmul.bf16.gmra.mxu0 %v470
    %v1179 = vpop.f32.mrf.mxu0
    %v1180 = vadd.f32 0.0, %v1179
    %v1181 = vpop.f32.mrf.mxu0
    %v1182 = vadd.f32 0.0, %v1181
    %1183 = vdwg.mxu0
    %1184 = vmatpush.bf16.msra.mxu0 %v919
    %1185 = vmatpush.bf16.msra.mxu0 %v915
    %1186 = vmatpush.bf16.msra.mxu0 %v911
    %1187 = vmatpush.bf16.msra.mxu0 %v907
    %1188 = vmatpush.bf16.msra.mxu0 %v903
    %1189 = vmatpush.bf16.msra.mxu0 %v899
    %1190 = vmatpush.bf16.msra.mxu0 %v895
    %1191 = vmatpush.bf16.msra.mxu0 %v891
    %1192 = vmatmul.bf16.gmra.mxu0 %v471
    %v1193 = vpop.f32.mrf.mxu0
    %v1194 = vadd.f32 %v1180, %v1193
    %v1195 = vpop.f32.mrf.mxu0
    %v1196 = vadd.f32 %v1182, %v1195
    %1197 = vdwg.mxu0
    %1198 = vmatpush.bf16.msra.mxu0 %v951
    %1199 = vmatpush.bf16.msra.mxu0 %v947
    %1200 = vmatpush.bf16.msra.mxu0 %v943
    %1201 = vmatpush.bf16.msra.mxu0 %v939
    %1202 = vmatpush.bf16.msra.mxu0 %v935
    %1203 = vmatpush.bf16.msra.mxu0 %v931
    %1204 = vmatpush.bf16.msra.mxu0 %v927
    %1205 = vmatpush.bf16.msra.mxu0 %v923
    %1206 = vmatmul.bf16.gmra.mxu0 %v472
    %v1207 = vpop.f32.mrf.mxu0
    %v1208 = vadd.f32 %v1194, %v1207
    %v1209 = vpop.f32.mrf.mxu0
    %v1210 = vadd.f32 %v1196, %v1209
    %1211 = vdwg.mxu0
    %1212 = vmatpush.bf16.msra.mxu0 %v983
    %1213 = vmatpush.bf16.msra.mxu0 %v979
    %1214 = vmatpush.bf16.msra.mxu0 %v975
    %1215 = vmatpush.bf16.msra.mxu0 %v971
    %1216 = vmatpush.bf16.msra.mxu0 %v967
    %1217 = vmatpush.bf16.msra.mxu0 %v963
    %1218 = vmatpush.bf16.msra.mxu0 %v959
    %1219 = vmatpush.bf16.msra.mxu0 %v955
    %1220 = vmatmul.bf16.gmra.mxu0 %v473
    %v1221 = vpop.f32.mrf.mxu0
    %v1222 = vadd.f32 %v1208, %v1221
    %v1223 = vpop.f32.mrf.mxu0
    %v1224 = vadd.f32 %v1210, %v1223
    %1225 = vdwg.mxu0
    %1226 = vmatpush.bf16.msra.mxu0 %v888
    %1227 = vmatpush.bf16.msra.mxu0 %v884
    %1228 = vmatpush.bf16.msra.mxu0 %v880
    %1229 = vmatpush.bf16.msra.mxu0 %v876
    %1230 = vmatpush.bf16.msra.mxu0 %v872
    %1231 = vmatpush.bf16.msra.mxu0 %v868
    %1232 = vmatpush.bf16.msra.mxu0 %v864
    %1233 = vmatpush.bf16.msra.mxu0 %v860
    %1234 = vmatmul.bf16.gmra.mxu0 %v470
    %v1235 = vpop.f32.mrf.mxu0
    %v1236 = vadd.f32 0.0, %v1235
    %v1237 = vpop.f32.mrf.mxu0
    %v1238 = vadd.f32 0.0, %v1237
    %1239 = vdwg.mxu0
    %1240 = vmatpush.bf16.msra.mxu0 %v920
    %1241 = vmatpush.bf16.msra.mxu0 %v916
    %1242 = vmatpush.bf16.msra.mxu0 %v912
    %1243 = vmatpush.bf16.msra.mxu0 %v908
    %1244 = vmatpush.bf16.msra.mxu0 %v904
    %1245 = vmatpush.bf16.msra.mxu0 %v900
    %1246 = vmatpush.bf16.msra.mxu0 %v896
    %1247 = vmatpush.bf16.msra.mxu0 %v892
    %1248 = vmatmul.bf16.gmra.mxu0 %v471
    %v1249 = vpop.f32.mrf.mxu0
    %v1250 = vadd.f32 %v1236, %v1249
    %v1251 = vpop.f32.mrf.mxu0
    %v1252 = vadd.f32 %v1238, %v1251
    %1253 = vdwg.mxu0
    %1254 = vmatpush.bf16.msra.mxu0 %v952
    %1255 = vmatpush.bf16.msra.mxu0 %v948
    %1256 = vmatpush.bf16.msra.mxu0 %v944
    %1257 = vmatpush.bf16.msra.mxu0 %v940
    %1258 = vmatpush.bf16.msra.mxu0 %v936
    %1259 = vmatpush.bf16.msra.mxu0 %v932
    %1260 = vmatpush.bf16.msra.mxu0 %v928
    %1261 = vmatpush.bf16.msra.mxu0 %v924
    %1262 = vmatmul.bf16.gmra.mxu0 %v472
    %v1263 = vpop.f32.mrf.mxu0
    %v1264 = vadd.f32 %v1250, %v1263
    %v1265 = vpop.f32.mrf.mxu0
    %v1266 = vadd.f32 %v1252, %v1265
    %1267 = vdwg.mxu0
    %1268 = vmatpush.bf16.msra.mxu0 %v984
    %1269 = vmatpush.bf16.msra.mxu0 %v980
    %1270 = vmatpush.bf16.msra.mxu0 %v976
    %1271 = vmatpush.bf16.msra.mxu0 %v972
    %1272 = vmatpush.bf16.msra.mxu0 %v968
    %1273 = vmatpush.bf16.msra.mxu0 %v964
    %1274 = vmatpush.bf16.msra.mxu0 %v960
    %1275 = vmatpush.bf16.msra.mxu0 %v956
    %1276 = vmatmul.bf16.gmra.mxu0 %v473
    %v1277 = vpop.f32.mrf.mxu0
    %v1278 = vadd.f32 %v1264, %v1277
    %v1279 = vpop.f32.mrf.mxu0
    %v1280 = vadd.f32 %v1266, %v1279
    %1281 = vdwg.mxu0
    %1282 = vmatpush.bf16.msra.mxu0 %v889
    %1283 = vmatpush.bf16.msra.mxu0 %v885
    %1284 = vmatpush.bf16.msra.mxu0 %v881
    %1285 = vmatpush.bf16.msra.mxu0 %v877
    %1286 = vmatpush.bf16.msra.mxu0 %v873
    %1287 = vmatpush.bf16.msra.mxu0 %v869
    %1288 = vmatpush.bf16.msra.mxu0 %v865
    %1289 = vmatpush.bf16.msra.mxu0 %v861
    %1290 = vmatmul.bf16.gmra.mxu0 %v470
    %v1291 = vpop.f32.mrf.mxu0
    %v1292 = vadd.f32 0.0, %v1291
    %v1293 = vpop.f32.mrf.mxu0
    %v1294 = vadd.f32 0.0, %v1293
    %1295 = vdwg.mxu0
    %1296 = vmatpush.bf16.msra.mxu0 %v921
    %1297 = vmatpush.bf16.msra.mxu0 %v917
    %1298 = vmatpush.bf16.msra.mxu0 %v913
    %1299 = vmatpush.bf16.msra.mxu0 %v909
    %1300 = vmatpush.bf16.msra.mxu0 %v905
    %1301 = vmatpush.bf16.msra.mxu0 %v901
    %1302 = vmatpush.bf16.msra.mxu0 %v897
    %1303 = vmatpush.bf16.msra.mxu0 %v893
    %1304 = vmatmul.bf16.gmra.mxu0 %v471
    %v1305 = vpop.f32.mrf.mxu0
    %v1306 = vadd.f32 %v1292, %v1305
    %v1307 = vpop.f32.mrf.mxu0
    %v1308 = vadd.f32 %v1294, %v1307
    %1309 = vdwg.mxu0
    %1310 = vmatpush.bf16.msra.mxu0 %v953
    %1311 = vmatpush.bf16.msra.mxu0 %v949
    %1312 = vmatpush.bf16.msra.mxu0 %v945
    %1313 = vmatpush.bf16.msra.mxu0 %v941
    %1314 = vmatpush.bf16.msra.mxu0 %v937
    %1315 = vmatpush.bf16.msra.mxu0 %v933
    %1316 = vmatpush.bf16.msra.mxu0 %v929
    %1317 = vmatpush.bf16.msra.mxu0 %v925
    %1318 = vmatmul.bf16.gmra.mxu0 %v472
    %v1319 = vpop.f32.mrf.mxu0
    %v1320 = vadd.f32 %v1306, %v1319
    %v1321 = vpop.f32.mrf.mxu0
    %v1322 = vadd.f32 %v1308, %v1321
    %1323 = vdwg.mxu0
    %1324 = vmatpush.bf16.msra.mxu0 %v985
    %1325 = vmatpush.bf16.msra.mxu0 %v981
    %1326 = vmatpush.bf16.msra.mxu0 %v977
    %1327 = vmatpush.bf16.msra.mxu0 %v973
    %1328 = vmatpush.bf16.msra.mxu0 %v969
    %1329 = vmatpush.bf16.msra.mxu0 %v965
    %1330 = vmatpush.bf16.msra.mxu0 %v961
    %1331 = vmatpush.bf16.msra.mxu0 %v957
    %1332 = vmatmul.bf16.gmra.mxu0 %v473
    %v1333 = vpop.f32.mrf.mxu0
    %v1334 = vadd.f32 %v1320, %v1333
    %v1335 = vpop.f32.mrf.mxu0
    %v1336 = vadd.f32 %v1322, %v1335
    %1337 = vdwg.mxu0
    %v1338 = vpack.c.bf16 %v1168, %v1166
    %v1339 = vpack.c.bf16 %v1224, %v1222
    %v1340 = vpack.c.bf16 %v1280, %v1278
    %v1341 = vpack.c.bf16 %v1336, %v1334
    %v1344 = vunpack.c.l.b16 %v85
    %v1345 = vunpack.c.l.b16 %v86
    %v1346 = vpack.c.b16 %v1345, %v1344
    %v1348 = vsel %vm402, %v1346, 0
    %1350 = vmatpush.bf16.msra.mxu0 0
    %1351 = vmatpush.bf16.msra.mxu0 0
    %1352 = vmatpush.bf16.msra.mxu0 0
    %1353 = vmatpush.bf16.msra.mxu0 0
    %1354 = vmatpush.bf16.msra.mxu0 0
    %1355 = vmatpush.bf16.msra.mxu0 0
    %1356 = vmatpush.bf16.msra.mxu0 0
    %1357 = vmatpush.bf16.msra.mxu0 %v1338
    %1358 = vmatmul.bf16.gmra.mxu0 %v1348
    %v1359 = vpop.f32.mrf.mxu0
    %v1360 = vadd.f32 %v355, %v1359
    %v1361 = vpop.f32.mrf.mxu0
    %v1362 = vadd.f32 %v359, %v1361
    %1363 = vdwg.mxu0
    %1364 = vmatpush.bf16.msra.mxu0 0
    %1365 = vmatpush.bf16.msra.mxu0 0
    %1366 = vmatpush.bf16.msra.mxu0 0
    %1367 = vmatpush.bf16.msra.mxu0 0
    %1368 = vmatpush.bf16.msra.mxu0 0
    %1369 = vmatpush.bf16.msra.mxu0 0
    %1370 = vmatpush.bf16.msra.mxu0 0
    %1371 = vmatpush.bf16.msra.mxu0 %v1339
    %1372 = vmatmul.bf16.gmra.mxu0 %v1348
    %v1373 = vpop.f32.mrf.mxu0
    %v1374 = vadd.f32 %v356, %v1373
    %v1375 = vpop.f32.mrf.mxu0
    %v1376 = vadd.f32 %v360, %v1375
    %1377 = vdwg.mxu0
    %1378 = vmatpush.bf16.msra.mxu0 0
    %1379 = vmatpush.bf16.msra.mxu0 0
    %1380 = vmatpush.bf16.msra.mxu0 0
    %1381 = vmatpush.bf16.msra.mxu0 0
    %1382 = vmatpush.bf16.msra.mxu0 0
    %1383 = vmatpush.bf16.msra.mxu0 0
    %1384 = vmatpush.bf16.msra.mxu0 0
    %1385 = vmatpush.bf16.msra.mxu0 %v1340
    %1386 = vmatmul.bf16.gmra.mxu0 %v1348
    %v1387 = vpop.f32.mrf.mxu0
    %v1388 = vadd.f32 %v357, %v1387
    %v1389 = vpop.f32.mrf.mxu0
    %v1390 = vadd.f32 %v361, %v1389
    %1391 = vdwg.mxu0
    %1392 = vmatpush.bf16.msra.mxu0 0
    %1393 = vmatpush.bf16.msra.mxu0 0
    %1394 = vmatpush.bf16.msra.mxu0 0
    %1395 = vmatpush.bf16.msra.mxu0 0
    %1396 = vmatpush.bf16.msra.mxu0 0
    %1397 = vmatpush.bf16.msra.mxu0 0
    %1398 = vmatpush.bf16.msra.mxu0 0
    %1399 = vmatpush.bf16.msra.mxu0 %v1341
    %1400 = vmatmul.bf16.gmra.mxu0 %v1348
    %v1401 = vpop.f32.mrf.mxu0
    %v1402 = vadd.f32 %v358, %v1401
    %v1403 = vpop.f32.mrf.mxu0
    %v1404 = vadd.f32 %v362, %v1403
    %1405 = vdwg.mxu0
    %v1406 = vmax.f32 %v1360, 0.0
    %v1407 = vmax.f32 %v1374, 0.0
    %v1408 = vmax.f32 %v1388, 0.0
    %v1409 = vmax.f32 %v1402, 0.0
    %v1410 = vmax.f32 %v1362, 0.0
    %v1411 = vmax.f32 %v1376, 0.0
    %v1412 = vmax.f32 %v1390, 0.0
    %v1413 = vmax.f32 %v1404, 0.0
    %v1414 = vpack.c.bf16 %v1410, %v1406
    %v1415 = vpack.c.bf16 %v1411, %v1407
    %v1416 = vpack.c.bf16 %v1412, %v1408
    %v1417 = vpack.c.bf16 %v1413, %v1409
    %v1546 = vunpack.c.l.b16 %v219
    %v1547 = vunpack.c.h.b16 %v219
    %v1548 = vunpack.c.l.b16 %v220
    %v1549 = vunpack.c.h.b16 %v220
    %v1550 = vunpack.c.l.b16 %v221
    %v1551 = vunpack.c.h.b16 %v221
    %v1552 = vunpack.c.l.b16 %v222
    %v1553 = vunpack.c.h.b16 %v222
    %v1554 = vunpack.c.l.b16 %v223
    %v1555 = vunpack.c.h.b16 %v223
    %v1556 = vunpack.c.l.b16 %v224
    %v1557 = vunpack.c.h.b16 %v224
    %v1558 = vunpack.c.l.b16 %v225
    %v1559 = vunpack.c.h.b16 %v225
    %v1560 = vunpack.c.l.b16 %v226
    %v1561 = vunpack.c.h.b16 %v226
    %v1562 = vunpack.c.l.b16 %v227
    %v1563 = vunpack.c.h.b16 %v227
    %v1564 = vunpack.c.l.b16 %v228
    %v1565 = vunpack.c.h.b16 %v228
    %v1566 = vunpack.c.l.b16 %v229
    %v1567 = vunpack.c.h.b16 %v229
    %v1568 = vunpack.c.l.b16 %v230
    %v1569 = vunpack.c.h.b16 %v230
    %v1570 = vunpack.c.l.b16 %v231
    %v1571 = vunpack.c.h.b16 %v231
    %v1572 = vunpack.c.l.b16 %v232
    %v1573 = vunpack.c.h.b16 %v232
    %v1574 = vunpack.c.l.b16 %v233
    %v1575 = vunpack.c.h.b16 %v233
    %v1576 = vunpack.c.l.b16 %v234
    %v1577 = vunpack.c.h.b16 %v234
    %v1578 = vunpack.c.l.b16 %v235
    %v1579 = vunpack.c.h.b16 %v235
    %v1580 = vunpack.c.l.b16 %v236
    %v1581 = vunpack.c.h.b16 %v236
    %v1582 = vunpack.c.l.b16 %v237
    %v1583 = vunpack.c.h.b16 %v237
    %v1584 = vunpack.c.l.b16 %v238
    %v1585 = vunpack.c.h.b16 %v238
    %v1586 = vunpack.c.l.b16 %v239
    %v1587 = vunpack.c.h.b16 %v239
    %v1588 = vunpack.c.l.b16 %v240
    %v1589 = vunpack.c.h.b16 %v240
    %v1590 = vunpack.c.l.b16 %v241
    %v1591 = vunpack.c.h.b16 %v241
    %v1592 = vunpack.c.l.b16 %v242
    %v1593 = vunpack.c.h.b16 %v242
    %v1594 = vunpack.c.l.b16 %v243
    %v1595 = vunpack.c.h.b16 %v243
    %v1596 = vunpack.c.l.b16 %v244
    %v1597 = vunpack.c.h.b16 %v244
    %v1598 = vunpack.c.l.b16 %v245
    %v1599 = vunpack.c.h.b16 %v245
    %v1600 = vunpack.c.l.b16 %v246
    %v1601 = vunpack.c.h.b16 %v246
    %v1602 = vunpack.c.l.b16 %v247
    %v1603 = vunpack.c.h.b16 %v247
    %v1604 = vunpack.c.l.b16 %v248
    %v1605 = vunpack.c.h.b16 %v248
    %v1606 = vunpack.c.l.b16 %v249
    %v1607 = vunpack.c.h.b16 %v249
    %v1608 = vunpack.c.l.b16 %v250
    %v1609 = vunpack.c.h.b16 %v250
    %v1610 = vunpack.c.l.b16 %v251
    %v1611 = vunpack.c.h.b16 %v251
    %v1612 = vunpack.c.l.b16 %v252
    %v1613 = vunpack.c.h.b16 %v252
    %v1614 = vunpack.c.l.b16 %v253
    %v1615 = vunpack.c.h.b16 %v253
    %v1616 = vunpack.c.l.b16 %v254
    %v1617 = vunpack.c.h.b16 %v254
    %v1618 = vunpack.c.l.b16 %v255
    %v1619 = vunpack.c.h.b16 %v255
    %v1620 = vunpack.c.l.b16 %v256
    %v1621 = vunpack.c.h.b16 %v256
    %v1622 = vunpack.c.l.b16 %v257
    %v1623 = vunpack.c.h.b16 %v257
    %v1624 = vunpack.c.l.b16 %v258
    %v1625 = vunpack.c.h.b16 %v258
    %v1626 = vunpack.c.l.b16 %v259
    %v1627 = vunpack.c.h.b16 %v259
    %v1628 = vunpack.c.l.b16 %v260
    %v1629 = vunpack.c.h.b16 %v260
    %v1630 = vunpack.c.l.b16 %v261
    %v1631 = vunpack.c.h.b16 %v261
    %v1632 = vunpack.c.l.b16 %v262
    %v1633 = vunpack.c.h.b16 %v262
    %v1634 = vunpack.c.l.b16 %v263
    %v1635 = vunpack.c.h.b16 %v263
    %v1636 = vunpack.c.l.b16 %v264
    %v1637 = vunpack.c.h.b16 %v264
    %v1638 = vunpack.c.l.b16 %v265
    %v1639 = vunpack.c.h.b16 %v265
    %v1640 = vunpack.c.l.b16 %v266
    %v1641 = vunpack.c.h.b16 %v266
    %v1642 = vunpack.c.l.b16 %v267
    %v1643 = vunpack.c.h.b16 %v267
    %v1644 = vunpack.c.l.b16 %v268
    %v1645 = vunpack.c.h.b16 %v268
    %v1646 = vunpack.c.l.b16 %v269
    %v1647 = vunpack.c.h.b16 %v269
    %v1648 = vunpack.c.l.b16 %v270
    %v1649 = vunpack.c.h.b16 %v270
    %v1650 = vunpack.c.l.b16 %v271
    %v1651 = vunpack.c.h.b16 %v271
    %v1652 = vunpack.c.l.b16 %v272
    %v1653 = vunpack.c.h.b16 %v272
    %v1654 = vunpack.c.l.b16 %v273
    %v1655 = vunpack.c.h.b16 %v273
    %v1656 = vunpack.c.l.b16 %v274
    %v1657 = vunpack.c.h.b16 %v274
    %v1658 = vunpack.c.l.b16 %v275
    %v1659 = vunpack.c.h.b16 %v275
    %v1660 = vunpack.c.l.b16 %v276
    %v1661 = vunpack.c.h.b16 %v276
    %v1662 = vunpack.c.l.b16 %v277
    %v1663 = vunpack.c.h.b16 %v277
    %v1664 = vunpack.c.l.b16 %v278
    %v1665 = vunpack.c.h.b16 %v278
    %v1666 = vunpack.c.l.b16 %v279
    %v1667 = vunpack.c.h.b16 %v279
    %v1668 = vunpack.c.l.b16 %v280
    %v1669 = vunpack.c.h.b16 %v280
    %v1670 = vunpack.c.l.b16 %v281
    %v1671 = vunpack.c.h.b16 %v281
    %v1672 = vunpack.c.l.b16 %v282
    %v1673 = vunpack.c.h.b16 %v282
    %v1674 = vunpack.c.l.b16 %v283
    %v1675 = vunpack.c.h.b16 %v283
    %v1676 = vunpack.c.l.b16 %v284
    %v1677 = vunpack.c.h.b16 %v284
    %v1678 = vunpack.c.l.b16 %v285
    %v1679 = vunpack.c.h.b16 %v285
    %v1680 = vunpack.c.l.b16 %v286
    %v1681 = vunpack.c.h.b16 %v286
    %v1682 = vunpack.c.l.b16 %v287
    %v1683 = vunpack.c.h.b16 %v287
    %v1684 = vunpack.c.l.b16 %v288
    %v1685 = vunpack.c.h.b16 %v288
    %v1686 = vunpack.c.l.b16 %v289
    %v1687 = vunpack.c.h.b16 %v289
    %v1688 = vunpack.c.l.b16 %v290
    %v1689 = vunpack.c.h.b16 %v290
    %v1690 = vunpack.c.l.b16 %v291
    %v1691 = vunpack.c.h.b16 %v291
    %v1692 = vunpack.c.l.b16 %v292
    %v1693 = vunpack.c.h.b16 %v292
    %v1694 = vunpack.c.l.b16 %v293
    %v1695 = vunpack.c.h.b16 %v293
    %v1696 = vunpack.c.l.b16 %v294
    %v1697 = vunpack.c.h.b16 %v294
    %v1698 = vunpack.c.l.b16 %v295
    %v1699 = vunpack.c.h.b16 %v295
    %v1700 = vunpack.c.l.b16 %v296
    %v1701 = vunpack.c.h.b16 %v296
    %v1702 = vunpack.c.l.b16 %v297
    %v1703 = vunpack.c.h.b16 %v297
    %v1704 = vunpack.c.l.b16 %v298
    %v1705 = vunpack.c.h.b16 %v298
    %v1706 = vunpack.c.l.b16 %v299
    %v1707 = vunpack.c.h.b16 %v299
    %v1708 = vunpack.c.l.b16 %v300
    %v1709 = vunpack.c.h.b16 %v300
    %v1710 = vunpack.c.l.b16 %v301
    %v1711 = vunpack.c.h.b16 %v301
    %v1712 = vunpack.c.l.b16 %v302
    %v1713 = vunpack.c.h.b16 %v302
    %v1714 = vunpack.c.l.b16 %v303
    %v1715 = vunpack.c.h.b16 %v303
    %v1716 = vunpack.c.l.b16 %v304
    %v1717 = vunpack.c.h.b16 %v304
    %v1718 = vunpack.c.l.b16 %v305
    %v1719 = vunpack.c.h.b16 %v305
    %v1720 = vunpack.c.l.b16 %v306
    %v1721 = vunpack.c.h.b16 %v306
    %v1722 = vunpack.c.l.b16 %v307
    %v1723 = vunpack.c.h.b16 %v307
    %v1724 = vunpack.c.l.b16 %v308
    %v1725 = vunpack.c.h.b16 %v308
    %v1726 = vunpack.c.l.b16 %v309
    %v1727 = vunpack.c.h.b16 %v309
    %v1728 = vunpack.c.l.b16 %v310
    %v1729 = vunpack.c.h.b16 %v310
    %v1730 = vunpack.c.l.b16 %v311
    %v1731 = vunpack.c.h.b16 %v311
    %v1732 = vunpack.c.l.b16 %v312
    %v1733 = vunpack.c.h.b16 %v312
    %v1734 = vunpack.c.l.b16 %v313
    %v1735 = vunpack.c.h.b16 %v313
    %v1736 = vunpack.c.l.b16 %v314
    %v1737 = vunpack.c.h.b16 %v314
    %v1738 = vunpack.c.l.b16 %v315
    %v1739 = vunpack.c.h.b16 %v315
    %v1740 = vunpack.c.l.b16 %v316
    %v1741 = vunpack.c.h.b16 %v316
    %v1742 = vunpack.c.l.b16 %v317
    %v1743 = vunpack.c.h.b16 %v317
    %v1744 = vunpack.c.l.b16 %v318
    %v1745 = vunpack.c.h.b16 %v318
    %v1746 = vunpack.c.l.b16 %v319
    %v1747 = vunpack.c.h.b16 %v319
    %v1748 = vunpack.c.l.b16 %v320
    %v1749 = vunpack.c.h.b16 %v320
    %v1750 = vunpack.c.l.b16 %v321
    %v1751 = vunpack.c.h.b16 %v321
    %v1752 = vunpack.c.l.b16 %v322
    %v1753 = vunpack.c.h.b16 %v322
    %v1754 = vunpack.c.l.b16 %v323
    %v1755 = vunpack.c.h.b16 %v323
    %v1756 = vunpack.c.l.b16 %v324
    %v1757 = vunpack.c.h.b16 %v324
    %v1758 = vunpack.c.l.b16 %v325
    %v1759 = vunpack.c.h.b16 %v325
    %v1760 = vunpack.c.l.b16 %v326
    %v1761 = vunpack.c.h.b16 %v326
    %v1762 = vunpack.c.l.b16 %v327
    %v1763 = vunpack.c.h.b16 %v327
    %v1764 = vunpack.c.l.b16 %v328
    %v1765 = vunpack.c.h.b16 %v328
    %v1766 = vunpack.c.l.b16 %v329
    %v1767 = vunpack.c.h.b16 %v329
    %v1768 = vunpack.c.l.b16 %v330
    %v1769 = vunpack.c.h.b16 %v330
    %v1770 = vunpack.c.l.b16 %v331
    %v1771 = vunpack.c.h.b16 %v331
    %v1772 = vunpack.c.l.b16 %v332
    %v1773 = vunpack.c.h.b16 %v332
    %v1774 = vunpack.c.l.b16 %v333
    %v1775 = vunpack.c.h.b16 %v333
    %v1776 = vunpack.c.l.b16 %v334
    %v1777 = vunpack.c.h.b16 %v334
    %v1778 = vunpack.c.l.b16 %v335
    %v1779 = vunpack.c.h.b16 %v335
    %v1780 = vunpack.c.l.b16 %v336
    %v1781 = vunpack.c.h.b16 %v336
    %v1782 = vunpack.c.l.b16 %v337
    %v1783 = vunpack.c.h.b16 %v337
    %v1784 = vunpack.c.l.b16 %v338
    %v1785 = vunpack.c.h.b16 %v338
    %v1786 = vunpack.c.l.b16 %v339
    %v1787 = vunpack.c.h.b16 %v339
    %v1788 = vunpack.c.l.b16 %v340
    %v1789 = vunpack.c.h.b16 %v340
    %v1790 = vunpack.c.l.b16 %v341
    %v1791 = vunpack.c.h.b16 %v341
    %v1792 = vunpack.c.l.b16 %v342
    %v1793 = vunpack.c.h.b16 %v342
    %v1794 = vunpack.c.l.b16 %v343
    %v1795 = vunpack.c.h.b16 %v343
    %v1796 = vunpack.c.l.b16 %v344
    %v1797 = vunpack.c.h.b16 %v344
    %v1798 = vunpack.c.l.b16 %v345
    %v1799 = vunpack.c.h.b16 %v345
    %v1800 = vunpack.c.l.b16 %v346
    %v1801 = vunpack.c.h.b16 %v346
    %v1802 = vpack.c.b16 %v1550, %v1546
    %v1803 = vpack.c.b16 %v1551, %v1547
    %v1804 = vpack.c.b16 %v1552, %v1548
    %v1805 = vpack.c.b16 %v1553, %v1549
    %v1806 = vpack.c.b16 %v1558, %v1554
    %v1807 = vpack.c.b16 %v1559, %v1555
    %v1808 = vpack.c.b16 %v1560, %v1556
    %v1809 = vpack.c.b16 %v1561, %v1557
    %v1810 = vpack.c.b16 %v1566, %v1562
    %v1811 = vpack.c.b16 %v1567, %v1563
    %v1812 = vpack.c.b16 %v1568, %v1564
    %v1813 = vpack.c.b16 %v1569, %v1565
    %v1814 = vpack.c.b16 %v1574, %v1570
    %v1815 = vpack.c.b16 %v1575, %v1571
    %v1816 = vpack.c.b16 %v1576, %v1572
    %v1817 = vpack.c.b16 %v1577, %v1573
    %v1818 = vpack.c.b16 %v1582, %v1578
    %v1819 = vpack.c.b16 %v1583, %v1579
    %v1820 = vpack.c.b16 %v1584, %v1580
    %v1821 = vpack.c.b16 %v1585, %v1581
    %v1822 = vpack.c.b16 %v1590, %v1586
    %v1823 = vpack.c.b16 %v1591, %v1587
    %v1824 = vpack.c.b16 %v1592, %v1588
    %v1825 = vpack.c.b16 %v1593, %v1589
    %v1826 = vpack.c.b16 %v1598, %v1594
    %v1827 = vpack.c.b16 %v1599, %v1595
    %v1828 = vpack.c.b16 %v1600, %v1596
    %v1829 = vpack.c.b16 %v1601, %v1597
    %v1830 = vpack.c.b16 %v1606, %v1602
    %v1831 = vpack.c.b16 %v1607, %v1603
    %v1832 = vpack.c.b16 %v1608, %v1604
    %v1833 = vpack.c.b16 %v1609, %v1605
    %v1834 = vpack.c.b16 %v1614, %v1610
    %v1835 = vpack.c.b16 %v1615, %v1611
    %v1836 = vpack.c.b16 %v1616, %v1612
    %v1837 = vpack.c.b16 %v1617, %v1613
    %v1838 = vpack.c.b16 %v1622, %v1618
    %v1839 = vpack.c.b16 %v1623, %v1619
    %v1840 = vpack.c.b16 %v1624, %v1620
    %v1841 = vpack.c.b16 %v1625, %v1621
    %v1842 = vpack.c.b16 %v1630, %v1626
    %v1843 = vpack.c.b16 %v1631, %v1627
    %v1844 = vpack.c.b16 %v1632, %v1628
    %v1845 = vpack.c.b16 %v1633, %v1629
    %v1846 = vpack.c.b16 %v1638, %v1634
    %v1847 = vpack.c.b16 %v1639, %v1635
    %v1848 = vpack.c.b16 %v1640, %v1636
    %v1849 = vpack.c.b16 %v1641, %v1637
    %v1850 = vpack.c.b16 %v1646, %v1642
    %v1851 = vpack.c.b16 %v1647, %v1643
    %v1852 = vpack.c.b16 %v1648, %v1644
    %v1853 = vpack.c.b16 %v1649, %v1645
    %v1854 = vpack.c.b16 %v1654, %v1650
    %v1855 = vpack.c.b16 %v1655, %v1651
    %v1856 = vpack.c.b16 %v1656, %v1652
    %v1857 = vpack.c.b16 %v1657, %v1653
    %v1858 = vpack.c.b16 %v1662, %v1658
    %v1859 = vpack.c.b16 %v1663, %v1659
    %v1860 = vpack.c.b16 %v1664, %v1660
    %v1861 = vpack.c.b16 %v1665, %v1661
    %v1862 = vpack.c.b16 %v1670, %v1666
    %v1863 = vpack.c.b16 %v1671, %v1667
    %v1864 = vpack.c.b16 %v1672, %v1668
    %v1865 = vpack.c.b16 %v1673, %v1669
    %v1866 = vpack.c.b16 %v1678, %v1674
    %v1867 = vpack.c.b16 %v1679, %v1675
    %v1868 = vpack.c.b16 %v1680, %v1676
    %v1869 = vpack.c.b16 %v1681, %v1677
    %v1870 = vpack.c.b16 %v1686, %v1682
    %v1871 = vpack.c.b16 %v1687, %v1683
    %v1872 = vpack.c.b16 %v1688, %v1684
    %v1873 = vpack.c.b16 %v1689, %v1685
    %v1874 = vpack.c.b16 %v1694, %v1690
    %v1875 = vpack.c.b16 %v1695, %v1691
    %v1876 = vpack.c.b16 %v1696, %v1692
    %v1877 = vpack.c.b16 %v1697, %v1693
    %v1878 = vpack.c.b16 %v1702, %v1698
    %v1879 = vpack.c.b16 %v1703, %v1699
    %v1880 = vpack.c.b16 %v1704, %v1700
    %v1881 = vpack.c.b16 %v1705, %v1701
    %v1882 = vpack.c.b16 %v1710, %v1706
    %v1883 = vpack.c.b16 %v1711, %v1707
    %v1884 = vpack.c.b16 %v1712, %v1708
    %v1885 = vpack.c.b16 %v1713, %v1709
    %v1886 = vpack.c.b16 %v1718, %v1714
    %v1887 = vpack.c.b16 %v1719, %v1715
    %v1888 = vpack.c.b16 %v1720, %v1716
    %v1889 = vpack.c.b16 %v1721, %v1717
    %v1890 = vpack.c.b16 %v1726, %v1722
    %v1891 = vpack.c.b16 %v1727, %v1723
    %v1892 = vpack.c.b16 %v1728, %v1724
    %v1893 = vpack.c.b16 %v1729, %v1725
    %v1894 = vpack.c.b16 %v1734, %v1730
    %v1895 = vpack.c.b16 %v1735, %v1731
    %v1896 = vpack.c.b16 %v1736, %v1732
    %v1897 = vpack.c.b16 %v1737, %v1733
    %v1898 = vpack.c.b16 %v1742, %v1738
    %v1899 = vpack.c.b16 %v1743, %v1739
    %v1900 = vpack.c.b16 %v1744, %v1740
    %v1901 = vpack.c.b16 %v1745, %v1741
    %v1902 = vpack.c.b16 %v1750, %v1746
    %v1903 = vpack.c.b16 %v1751, %v1747
    %v1904 = vpack.c.b16 %v1752, %v1748
    %v1905 = vpack.c.b16 %v1753, %v1749
    %v1906 = vpack.c.b16 %v1758, %v1754
    %v1907 = vpack.c.b16 %v1759, %v1755
    %v1908 = vpack.c.b16 %v1760, %v1756
    %v1909 = vpack.c.b16 %v1761, %v1757
    %v1910 = vpack.c.b16 %v1766, %v1762
    %v1911 = vpack.c.b16 %v1767, %v1763
    %v1912 = vpack.c.b16 %v1768, %v1764
    %v1913 = vpack.c.b16 %v1769, %v1765
    %v1914 = vpack.c.b16 %v1774, %v1770
    %v1915 = vpack.c.b16 %v1775, %v1771
    %v1916 = vpack.c.b16 %v1776, %v1772
    %v1917 = vpack.c.b16 %v1777, %v1773
    %v1918 = vpack.c.b16 %v1782, %v1778
    %v1919 = vpack.c.b16 %v1783, %v1779
    %v1920 = vpack.c.b16 %v1784, %v1780
    %v1921 = vpack.c.b16 %v1785, %v1781
    %v1922 = vpack.c.b16 %v1790, %v1786
    %v1923 = vpack.c.b16 %v1791, %v1787
    %v1924 = vpack.c.b16 %v1792, %v1788
    %v1925 = vpack.c.b16 %v1793, %v1789
    %v1926 = vpack.c.b16 %v1798, %v1794
    %v1927 = vpack.c.b16 %v1799, %v1795
    %v1928 = vpack.c.b16 %v1800, %v1796
    %v1929 = vpack.c.b16 %v1801, %v1797
    %2058 = vmatpush.bf16.msra.mxu0 %v1830
    %2059 = vmatpush.bf16.msra.mxu0 %v1826
    %2060 = vmatpush.bf16.msra.mxu0 %v1822
    %2061 = vmatpush.bf16.msra.mxu0 %v1818
    %2062 = vmatpush.bf16.msra.mxu0 %v1814
    %2063 = vmatpush.bf16.msra.mxu0 %v1810
    %2064 = vmatpush.bf16.msra.mxu0 %v1806
    %2065 = vmatpush.bf16.msra.mxu0 %v1802
    %2066 = vmatmul.bf16.gmra.mxu0 %v1414
    %v2067 = vpop.f32.mrf.mxu0
    %v2068 = vadd.f32 0.0, %v2067
    %v2069 = vpop.f32.mrf.mxu0
    %v2070 = vadd.f32 0.0, %v2069
    %2071 = vdwg.mxu0
    %2072 = vmatpush.bf16.msra.mxu0 %v1862
    %2073 = vmatpush.bf16.msra.mxu0 %v1858
    %2074 = vmatpush.bf16.msra.mxu0 %v1854
    %2075 = vmatpush.bf16.msra.mxu0 %v1850
    %2076 = vmatpush.bf16.msra.mxu0 %v1846
    %2077 = vmatpush.bf16.msra.mxu0 %v1842
    %2078 = vmatpush.bf16.msra.mxu0 %v1838
    %2079 = vmatpush.bf16.msra.mxu0 %v1834
    %2080 = vmatmul.bf16.gmra.mxu0 %v1415
    %v2081 = vpop.f32.mrf.mxu0
    %v2082 = vadd.f32 %v2068, %v2081
    %v2083 = vpop.f32.mrf.mxu0
    %v2084 = vadd.f32 %v2070, %v2083
    %2085 = vdwg.mxu0
    %2086 = vmatpush.bf16.msra.mxu0 %v1894
    %2087 = vmatpush.bf16.msra.mxu0 %v1890
    %2088 = vmatpush.bf16.msra.mxu0 %v1886
    %2089 = vmatpush.bf16.msra.mxu0 %v1882
    %2090 = vmatpush.bf16.msra.mxu0 %v1878
    %2091 = vmatpush.bf16.msra.mxu0 %v1874
    %2092 = vmatpush.bf16.msra.mxu0 %v1870
    %2093 = vmatpush.bf16.msra.mxu0 %v1866
    %2094 = vmatmul.bf16.gmra.mxu0 %v1416
    %v2095 = vpop.f32.mrf.mxu0
    %v2096 = vadd.f32 %v2082, %v2095
    %v2097 = vpop.f32.mrf.mxu0
    %v2098 = vadd.f32 %v2084, %v2097
    %2099 = vdwg.mxu0
    %2100 = vmatpush.bf16.msra.mxu0 %v1926
    %2101 = vmatpush.bf16.msra.mxu0 %v1922
    %2102 = vmatpush.bf16.msra.mxu0 %v1918
    %2103 = vmatpush.bf16.msra.mxu0 %v1914
    %2104 = vmatpush.bf16.msra.mxu0 %v1910
    %2105 = vmatpush.bf16.msra.mxu0 %v1906
    %2106 = vmatpush.bf16.msra.mxu0 %v1902
    %2107 = vmatpush.bf16.msra.mxu0 %v1898
    %2108 = vmatmul.bf16.gmra.mxu0 %v1417
    %v2109 = vpop.f32.mrf.mxu0
    %v2110 = vadd.f32 %v2096, %v2109
    %v2111 = vpop.f32.mrf.mxu0
    %v2112 = vadd.f32 %v2098, %v2111
    %2113 = vdwg.mxu0
    %2114 = vmatpush.bf16.msra.mxu0 %v1831
    %2115 = vmatpush.bf16.msra.mxu0 %v1827
    %2116 = vmatpush.bf16.msra.mxu0 %v1823
    %2117 = vmatpush.bf16.msra.mxu0 %v1819
    %2118 = vmatpush.bf16.msra.mxu0 %v1815
    %2119 = vmatpush.bf16.msra.mxu0 %v1811
    %2120 = vmatpush.bf16.msra.mxu0 %v1807
    %2121 = vmatpush.bf16.msra.mxu0 %v1803
    %2122 = vmatmul.bf16.gmra.mxu0 %v1414
    %v2123 = vpop.f32.mrf.mxu0
    %v2124 = vadd.f32 0.0, %v2123
    %v2125 = vpop.f32.mrf.mxu0
    %v2126 = vadd.f32 0.0, %v2125
    %2127 = vdwg.mxu0
    %2128 = vmatpush.bf16.msra.mxu0 %v1863
    %2129 = vmatpush.bf16.msra.mxu0 %v1859
    %2130 = vmatpush.bf16.msra.mxu0 %v1855
    %2131 = vmatpush.bf16.msra.mxu0 %v1851
    %2132 = vmatpush.bf16.msra.mxu0 %v1847
    %2133 = vmatpush.bf16.msra.mxu0 %v1843
    %2134 = vmatpush.bf16.msra.mxu0 %v1839
    %2135 = vmatpush.bf16.msra.mxu0 %v1835
    %2136 = vmatmul.bf16.gmra.mxu0 %v1415
    %v2137 = vpop.f32.mrf.mxu0
    %v2138 = vadd.f32 %v2124, %v2137
    %v2139 = vpop.f32.mrf.mxu0
    %v2140 = vadd.f32 %v2126, %v2139
    %2141 = vdwg.mxu0
    %2142 = vmatpush.bf16.msra.mxu0 %v1895
    %2143 = vmatpush.bf16.msra.mxu0 %v1891
    %2144 = vmatpush.bf16.msra.mxu0 %v1887
    %2145 = vmatpush.bf16.msra.mxu0 %v1883
    %2146 = vmatpush.bf16.msra.mxu0 %v1879
    %2147 = vmatpush.bf16.msra.mxu0 %v1875
    %2148 = vmatpush.bf16.msra.mxu0 %v1871
    %2149 = vmatpush.bf16.msra.mxu0 %v1867
    %2150 = vmatmul.bf16.gmra.mxu0 %v1416
    %v2151 = vpop.f32.mrf.mxu0
    %v2152 = vadd.f32 %v2138, %v2151
    %v2153 = vpop.f32.mrf.mxu0
    %v2154 = vadd.f32 %v2140, %v2153
    %2155 = vdwg.mxu0
    %2156 = vmatpush.bf16.msra.mxu0 %v1927
    %2157 = vmatpush.bf16.msra.mxu0 %v1923
    %2158 = vmatpush.bf16.msra.mxu0 %v1919
    %2159 = vmatpush.bf16.msra.mxu0 %v1915
    %2160 = vmatpush.bf16.msra.mxu0 %v1911
    %2161 = vmatpush.bf16.msra.mxu0 %v1907
    %2162 = vmatpush.bf16.msra.mxu0 %v1903
    %2163 = vmatpush.bf16.msra.mxu0 %v1899
    %2164 = vmatmul.bf16.gmra.mxu0 %v1417
    %v2165 = vpop.f32.mrf.mxu0
    %v2166 = vadd.f32 %v2152, %v2165
    %v2167 = vpop.f32.mrf.mxu0
    %v2168 = vadd.f32 %v2154, %v2167
    %2169 = vdwg.mxu0
    %2170 = vmatpush.bf16.msra.mxu0 %v1832
    %2171 = vmatpush.bf16.msra.mxu0 %v1828
    %2172 = vmatpush.bf16.msra.mxu0 %v1824
    %2173 = vmatpush.bf16.msra.mxu0 %v1820
    %2174 = vmatpush.bf16.msra.mxu0 %v1816
    %2175 = vmatpush.bf16.msra.mxu0 %v1812
    %2176 = vmatpush.bf16.msra.mxu0 %v1808
    %2177 = vmatpush.bf16.msra.mxu0 %v1804
    %2178 = vmatmul.bf16.gmra.mxu0 %v1414
    %v2179 = vpop.f32.mrf.mxu0
    %v2180 = vadd.f32 0.0, %v2179
    %v2181 = vpop.f32.mrf.mxu0
    %v2182 = vadd.f32 0.0, %v2181
    %2183 = vdwg.mxu0
    %2184 = vmatpush.bf16.msra.mxu0 %v1864
    %2185 = vmatpush.bf16.msra.mxu0 %v1860
    %2186 = vmatpush.bf16.msra.mxu0 %v1856
    %2187 = vmatpush.bf16.msra.mxu0 %v1852
    %2188 = vmatpush.bf16.msra.mxu0 %v1848
    %2189 = vmatpush.bf16.msra.mxu0 %v1844
    %2190 = vmatpush.bf16.msra.mxu0 %v1840
    %2191 = vmatpush.bf16.msra.mxu0 %v1836
    %2192 = vmatmul.bf16.gmra.mxu0 %v1415
    %v2193 = vpop.f32.mrf.mxu0
    %v2194 = vadd.f32 %v2180, %v2193
    %v2195 = vpop.f32.mrf.mxu0
    %v2196 = vadd.f32 %v2182, %v2195
    %2197 = vdwg.mxu0
    %2198 = vmatpush.bf16.msra.mxu0 %v1896
    %2199 = vmatpush.bf16.msra.mxu0 %v1892
    %2200 = vmatpush.bf16.msra.mxu0 %v1888
    %2201 = vmatpush.bf16.msra.mxu0 %v1884
    %2202 = vmatpush.bf16.msra.mxu0 %v1880
    %2203 = vmatpush.bf16.msra.mxu0 %v1876
    %2204 = vmatpush.bf16.msra.mxu0 %v1872
    %2205 = vmatpush.bf16.msra.mxu0 %v1868
    %2206 = vmatmul.bf16.gmra.mxu0 %v1416
    %v2207 = vpop.f32.mrf.mxu0
    %v2208 = vadd.f32 %v2194, %v2207
    %v2209 = vpop.f32.mrf.mxu0
    %v2210 = vadd.f32 %v2196, %v2209
    %2211 = vdwg.mxu0
    %2212 = vmatpush.bf16.msra.mxu0 %v1928
    %2213 = vmatpush.bf16.msra.mxu0 %v1924
    %2214 = vmatpush.bf16.msra.mxu0 %v1920
    %2215 = vmatpush.bf16.msra.mxu0 %v1916
    %2216 = vmatpush.bf16.msra.mxu0 %v1912
    %2217 = vmatpush.bf16.msra.mxu0 %v1908
    %2218 = vmatpush.bf16.msra.mxu0 %v1904
    %2219 = vmatpush.bf16.msra.mxu0 %v1900
    %2220 = vmatmul.bf16.gmra.mxu0 %v1417
    %v2221 = vpop.f32.mrf.mxu0
    %v2222 = vadd.f32 %v2208, %v2221
    %v2223 = vpop.f32.mrf.mxu0
    %v2224 = vadd.f32 %v2210, %v2223
    %2225 = vdwg.mxu0
    %2226 = vmatpush.bf16.msra.mxu0 %v1833
    %2227 = vmatpush.bf16.msra.mxu0 %v1829
    %2228 = vmatpush.bf16.msra.mxu0 %v1825
    %2229 = vmatpush.bf16.msra.mxu0 %v1821
    %2230 = vmatpush.bf16.msra.mxu0 %v1817
    %2231 = vmatpush.bf16.msra.mxu0 %v1813
    %2232 = vmatpush.bf16.msra.mxu0 %v1809
    %2233 = vmatpush.bf16.msra.mxu0 %v1805
    %2234 = vmatmul.bf16.gmra.mxu0 %v1414
    %v2235 = vpop.f32.mrf.mxu0
    %v2236 = vadd.f32 0.0, %v2235
    %v2237 = vpop.f32.mrf.mxu0
    %v2238 = vadd.f32 0.0, %v2237
    %2239 = vdwg.mxu0
    %2240 = vmatpush.bf16.msra.mxu0 %v1865
    %2241 = vmatpush.bf16.msra.mxu0 %v1861
    %2242 = vmatpush.bf16.msra.mxu0 %v1857
    %2243 = vmatpush.bf16.msra.mxu0 %v1853
    %2244 = vmatpush.bf16.msra.mxu0 %v1849
    %2245 = vmatpush.bf16.msra.mxu0 %v1845
    %2246 = vmatpush.bf16.msra.mxu0 %v1841
    %2247 = vmatpush.bf16.msra.mxu0 %v1837
    %2248 = vmatmul.bf16.gmra.mxu0 %v1415
    %v2249 = vpop.f32.mrf.mxu0
    %v2250 = vadd.f32 %v2236, %v2249
    %v2251 = vpop.f32.mrf.mxu0
    %v2252 = vadd.f32 %v2238, %v2251
    %2253 = vdwg.mxu0
    %2254 = vmatpush.bf16.msra.mxu0 %v1897
    %2255 = vmatpush.bf16.msra.mxu0 %v1893
    %2256 = vmatpush.bf16.msra.mxu0 %v1889
    %2257 = vmatpush.bf16.msra.mxu0 %v1885
    %2258 = vmatpush.bf16.msra.mxu0 %v1881
    %2259 = vmatpush.bf16.msra.mxu0 %v1877
    %2260 = vmatpush.bf16.msra.mxu0 %v1873
    %2261 = vmatpush.bf16.msra.mxu0 %v1869
    %2262 = vmatmul.bf16.gmra.mxu0 %v1416
    %v2263 = vpop.f32.mrf.mxu0
    %v2264 = vadd.f32 %v2250, %v2263
    %v2265 = vpop.f32.mrf.mxu0
    %v2266 = vadd.f32 %v2252, %v2265
    %2267 = vdwg.mxu0
    %2268 = vmatpush.bf16.msra.mxu0 %v1929
    %2269 = vmatpush.bf16.msra.mxu0 %v1925
    %2270 = vmatpush.bf16.msra.mxu0 %v1921
    %2271 = vmatpush.bf16.msra.mxu0 %v1917
    %2272 = vmatpush.bf16.msra.mxu0 %v1913
    %2273 = vmatpush.bf16.msra.mxu0 %v1909
    %2274 = vmatpush.bf16.msra.mxu0 %v1905
    %2275 = vmatpush.bf16.msra.mxu0 %v1901
    %2276 = vmatmul.bf16.gmra.mxu0 %v1417
    %v2277 = vpop.f32.mrf.mxu0
    %v2278 = vadd.f32 %v2264, %v2277
    %v2279 = vpop.f32.mrf.mxu0
    %v2280 = vadd.f32 %v2266, %v2279
    %2281 = vdwg.mxu0
    %v2282 = vpack.c.bf16 %v2112, %v2110
    %v2283 = vpack.c.bf16 %v2168, %v2166
    %v2284 = vpack.c.bf16 %v2224, %v2222
    %v2285 = vpack.c.bf16 %v2280, %v2278
    %2286 = vmatpush.bf16.msra.mxu0 0
    %2287 = vmatpush.bf16.msra.mxu0 0
    %2288 = vmatpush.bf16.msra.mxu0 0
    %2289 = vmatpush.bf16.msra.mxu0 0
    %2290 = vmatpush.bf16.msra.mxu0 0
    %2291 = vmatpush.bf16.msra.mxu0 0
    %2292 = vmatpush.bf16.msra.mxu0 0
    %2293 = vmatpush.bf16.msra.mxu0 %v2282
    %2294 = vmatmul.bf16.gmra.mxu0 %v1348
    %v2295 = vpop.f32.mrf.mxu0
    %v2296 = vadd.f32 %v363, %v2295
    %v2297 = vpop.f32.mrf.mxu0
    %v2298 = vadd.f32 %v367, %v2297
    %2299 = vdwg.mxu0
    %2300 = vmatpush.bf16.msra.mxu0 0
    %2301 = vmatpush.bf16.msra.mxu0 0
    %2302 = vmatpush.bf16.msra.mxu0 0
    %2303 = vmatpush.bf16.msra.mxu0 0
    %2304 = vmatpush.bf16.msra.mxu0 0
    %2305 = vmatpush.bf16.msra.mxu0 0
    %2306 = vmatpush.bf16.msra.mxu0 0
    %2307 = vmatpush.bf16.msra.mxu0 %v2283
    %2308 = vmatmul.bf16.gmra.mxu0 %v1348
    %v2309 = vpop.f32.mrf.mxu0
    %v2310 = vadd.f32 %v364, %v2309
    %v2311 = vpop.f32.mrf.mxu0
    %v2312 = vadd.f32 %v368, %v2311
    %2313 = vdwg.mxu0
    %2314 = vmatpush.bf16.msra.mxu0 0
    %2315 = vmatpush.bf16.msra.mxu0 0
    %2316 = vmatpush.bf16.msra.mxu0 0
    %2317 = vmatpush.bf16.msra.mxu0 0
    %2318 = vmatpush.bf16.msra.mxu0 0
    %2319 = vmatpush.bf16.msra.mxu0 0
    %2320 = vmatpush.bf16.msra.mxu0 0
    %2321 = vmatpush.bf16.msra.mxu0 %v2284
    %2322 = vmatmul.bf16.gmra.mxu0 %v1348
    %v2323 = vpop.f32.mrf.mxu0
    %v2324 = vadd.f32 %v365, %v2323
    %v2325 = vpop.f32.mrf.mxu0
    %v2326 = vadd.f32 %v369, %v2325
    %2327 = vdwg.mxu0
    %2328 = vmatpush.bf16.msra.mxu0 0
    %2329 = vmatpush.bf16.msra.mxu0 0
    %2330 = vmatpush.bf16.msra.mxu0 0
    %2331 = vmatpush.bf16.msra.mxu0 0
    %2332 = vmatpush.bf16.msra.mxu0 0
    %2333 = vmatpush.bf16.msra.mxu0 0
    %2334 = vmatpush.bf16.msra.mxu0 0
    %2335 = vmatpush.bf16.msra.mxu0 %v2285
    %2336 = vmatmul.bf16.gmra.mxu0 %v1348
    %v2337 = vpop.f32.mrf.mxu0
    %v2338 = vadd.f32 %v366, %v2337
    %v2339 = vpop.f32.mrf.mxu0
    %v2340 = vadd.f32 %v370, %v2339
    %2341 = vdwg.mxu0
    %v2342 = vmax.f32 %v2296, 0.0
    %v2343 = vmax.f32 %v2310, 0.0
    %v2344 = vmax.f32 %v2324, 0.0
    %v2345 = vmax.f32 %v2338, 0.0
    %v2346 = vmax.f32 %v2298, 0.0
    %v2347 = vmax.f32 %v2312, 0.0
    %v2348 = vmax.f32 %v2326, 0.0
    %v2349 = vmax.f32 %v2340, 0.0
    %v2350 = vpack.c.bf16 %v2346, %v2342
    %v2351 = vpack.c.bf16 %v2347, %v2343
    %v2352 = vpack.c.bf16 %v2348, %v2344
    %v2353 = vpack.c.bf16 %v2349, %v2345
    %2354 = vmatpush.bf16.msra.mxu0 0
    %2355 = vmatpush.bf16.msra.mxu0 0
    %2356 = vmatpush.bf16.msra.mxu0 0
    %2357 = vmatpush.bf16.msra.mxu0 0
    %2358 = vmatpush.bf16.msra.mxu0 0
    %2359 = vmatpush.bf16.msra.mxu0 0
    %2360 = vmatpush.bf16.msra.mxu0 0
    %2361 = vmatpush.bf16.msra.mxu0 %v2350
    %2362 = vmatmul.bf16.gmra.mxu0 %v1348
    %v2363 = vpop.f32.mrf.mxu0
    %v2364 = vadd.f32 0.0, %v2363
    %v2365 = vpop.f32.mrf.mxu0
    %v2366 = vadd.f32 0.0, %v2365
    %2367 = vdwg.mxu0
    %2368 = vmatpush.bf16.msra.mxu0 0
    %2369 = vmatpush.bf16.msra.mxu0 0
    %2370 = vmatpush.bf16.msra.mxu0 0
    %2371 = vmatpush.bf16.msra.mxu0 0
    %2372 = vmatpush.bf16.msra.mxu0 0
    %2373 = vmatpush.bf16.msra.mxu0 0
    %2374 = vmatpush.bf16.msra.mxu0 0
    %2375 = vmatpush.bf16.msra.mxu0 %v2351
    %2376 = vmatmul.bf16.gmra.mxu0 %v1348
    %v2377 = vpop.f32.mrf.mxu0
    %v2378 = vadd.f32 0.0, %v2377
    %v2379 = vpop.f32.mrf.mxu0
    %v2380 = vadd.f32 0.0, %v2379
    %2381 = vdwg.mxu0
    %2382 = vmatpush.bf16.msra.mxu0 0
    %2383 = vmatpush.bf16.msra.mxu0 0
    %2384 = vmatpush.bf16.msra.mxu0 0
    %2385 = vmatpush.bf16.msra.mxu0 0
    %2386 = vmatpush.bf16.msra.mxu0 0
    %2387 = vmatpush.bf16.msra.mxu0 0
    %2388 = vmatpush.bf16.msra.mxu0 0
    %2389 = vmatpush.bf16.msra.mxu0 %v2352
    %2390 = vmatmul.bf16.gmra.mxu0 %v1348
    %v2391 = vpop.f32.mrf.mxu0
    %v2392 = vadd.f32 0.0, %v2391
    %v2393 = vpop.f32.mrf.mxu0
    %v2394 = vadd.f32 0.0, %v2393
    %2395 = vdwg.mxu0
    %2396 = vmatpush.bf16.msra.mxu0 0
    %2397 = vmatpush.bf16.msra.mxu0 0
    %2398 = vmatpush.bf16.msra.mxu0 0
    %2399 = vmatpush.bf16.msra.mxu0 0
    %2400 = vmatpush.bf16.msra.mxu0 0
    %2401 = vmatpush.bf16.msra.mxu0 0
    %2402 = vmatpush.bf16.msra.mxu0 0
    %2403 = vmatpush.bf16.msra.mxu0 %v2353
    %2404 = vmatmul.bf16.gmra.mxu0 %v1348
    %v2405 = vpop.f32.mrf.mxu0
    %v2406 = vadd.f32 0.0, %v2405
    %v2407 = vpop.f32.mrf.mxu0
    %v2408 = vadd.f32 0.0, %v2407
    %2409 = vdwg.mxu0
    %v2410 = vmul.f32 %v2364, %v371
    %v2411 = vmul.f32 %v2378, %v372
    %v2412 = vmul.f32 %v2392, %v373
    %v2413 = vmul.f32 %v2406, %v374
    %v2414 = vmul.f32 %v2366, %v375
    %v2415 = vmul.f32 %v2380, %v376
    %v2416 = vmul.f32 %v2394, %v377
    %v2417 = vmul.f32 %v2408, %v378
    %v2418 = vadd.f32 %v2410, %v2411
    %v2419 = vadd.f32 %v2418, %v2412
    %v2420 = vadd.f32 %v2419, %v2413
    %2421 = vadd.xlane.f32.xlu0 %v2420
    %v2422 = vpop.xlane.xlu0 %2421
    %v2423 = vadd.f32 %v2414, %v2415
    %v2424 = vadd.f32 %v2423, %v2416
    %v2425 = vadd.f32 %v2424, %v2417
    %2426 = vadd.xlane.f32.xlu0 %v2425
    %v2427 = vpop.xlane.xlu0 %2426
    %s2428 = sld [smem:[#allocation2]]
    %v2429 = vstv %s2428
    %v2430 = vadd.f32 %v2422, %v2429
    %v2431 = vadd.f32 %v2427, %v2429
    %vm2432 = vcmask 7168
    %2433 = vst.msk [vmem:[%s5] sm:$0xff] %vm2432, %v2430
    %2434 = vst.msk [vmem:[%s5 + $0x8] sm:$0xff] %vm2432, %v2431
    // Predicated region
    $region38: #{hgnn_forward.1} parent=1 // pred_check
      _
    $region39: #{hgnn_forward.1} parent=1 // pred_check_branch
      %2436 = sbr.rel (0) target = $region41
    $region40: #{hgnn_forward.1} parent=1 // pred_region
      _
    $region41: #{hgnn_forward.1} parent=1 // pred_fallthru
      _
    // Predicated region
    $region42: #{hgnn_forward.1} parent=1 // pred_check
      _
    $region43: #{hgnn_forward.1} parent=1 // pred_check_branch
      %2438 = sbr.rel (0) target = $region45
    $region44: #{hgnn_forward.1} parent=1 // pred_region
      _
    $region45: #{hgnn_forward.1} parent=1 // pred_fallthru
      _
    %2439 = vsyncpa [#allocation4], 1
    %2440 = vsyncpa [#allocation6], 1
    %2441 = vsyncpa [#allocation9], 1

</llo_original>
